<compile_context>
chip_gen: v7x
topology: tpu7x:2x2x1
jax: 0.10.0
libtpu: 0.0.40
codegen_flags: <defaults>
</compile_context>

<pallas_src>
import functools

import jax
import jax.numpy as jnp
import numpy as np
from jax import lax
from jax.experimental import pallas as pl
from jax.experimental.pallas import tpu as pltpu


# ----------------------------------------------------------------------------
# Small in-kernel integer helpers (power-of-two fast path).
# ----------------------------------------------------------------------------
def _idiv(x, d):
    if d & (d - 1) == 0:
        return jnp.right_shift(x, d.bit_length() - 1)
    return x // d      # TODO(synk): non-power-of-two spatial dims untested on TPU.


def _imod(x, d):
    if d & (d - 1) == 0:
        return jnp.bitwise_and(x, d - 1)
    return x % d       # TODO(synk): non-power-of-two spatial dims untested on TPU.


def _roll_lanes(x, shift):
    """Circular roll along the last (lane) axis via the XLU, on a 2-D view."""
    s = x.shape
    return pltpu.roll(x.reshape(-1, s[-1]), shift=shift, axis=1).reshape(s)


# ----------------------------------------------------------------------------
# Pallas kernel: one batch tile, full CCWBlock (identity left branch).
# ----------------------------------------------------------------------------
def _ccw_kernel(f_ref, crw_ref, p_ref, out_ref, *, H, W, Hc, Wc, C, hid):
    HW = H * W
    HcWc = Hc * Wc
    BT = f_ref.shape[0]                # batch elements in this block (static)

    pp = p_ref[...]                    # (C+1, 11+2*hid) packed constants

    # --- Nearest-neighbour upsample of cr_weight, fused as a one-hot matmul.
    #     E[q, p] = 1 iff coarse-src(p) == q, generated on-chip from iotas.
    p1 = lax.broadcasted_iota(jnp.int32, (1, HW), 1)
    hh = _idiv(p1, W)
    ww = _imod(p1, W)
    src = _idiv(hh * Hc, H) * Wc + _idiv(ww * Wc, W)             # (1, HW)
    qq = lax.broadcasted_iota(jnp.int32, (HcWc, 1), 0)
    e_mat = jnp.where(qq == src, 1.0, 0.0).astype(jnp.float32)   # (HcWc, HW)

    crw_up = jnp.dot(crw_ref[...].reshape(BT * C, HcWc), e_mat,
                     preferred_element_type=jnp.float32,
                     precision=lax.Precision.HIGHEST).reshape(BT, C, HW)

    xp = f_ref[:, C:2 * C, :] * crw_up                           # (BT, C, HW)

    # --- 3x3 depthwise conv: row-combine-then-column-shift.
    #     4 lane rolls (XLU) + 4 masked selects (VPU) instead of 8 + 8.
    pidx = lax.broadcasted_iota(jnp.int32, (1, 1, HW), 2)
    colw = _imod(pidx, W)
    row_m1 = jnp.where(pidx >= W, _roll_lanes(xp, W), 0.0)              # x[h-1, w]
    row_p1 = jnp.where(pidx < (H - 1) * W, _roll_lanes(xp, HW - W), 0.0)  # x[h+1, w]

    def tap(t):                        # (C, 1) BN-scaled tap, broadcasts over (BT,C,HW)
        return pp[0:C, t:t + 1]

    t_m1 = row_m1 * tap(0) + xp * tap(3) + row_p1 * tap(6)       # dw = -1 partial
    t_0 = row_m1 * tap(1) + xp * tap(4) + row_p1 * tap(7)        # dw =  0 partial
    t_p1 = row_m1 * tap(2) + xp * tap(5) + row_p1 * tap(8)       # dw = +1 partial

    acc = t_0
    acc = acc + jnp.where(colw >= 1, _roll_lanes(t_m1, 1), 0.0)
    acc = acc + jnp.where(colw <= W - 2, _roll_lanes(t_p1, HW - 1), 0.0)

    y = jnp.maximum(acc + pp[0:C, 9:10], 0.0)                    # DWConvBNAct(relu)

    # --- SpatialWeightModule: GAP -> fc1 (relu) -> fc2 (sigmoid) -> rescale.
    pooled = jnp.sum(y, axis=2, keepdims=True) * (1.0 / HW)      # (BT, C, 1)
    w1s = pp[0:C, 11 + hid:11 + 2 * hid]                         # (C, hid)
    b1 = pp[C:C + 1, 11 + hid:11 + 2 * hid]                      # (1, hid)
    h1 = jnp.maximum(
        jnp.sum(pooled * w1s, axis=1, keepdims=True) + b1, 0.0)  # (BT, 1, hid)
    w2t = pp[0:C, 11:11 + hid]                                   # (C, hid)
    sw = jax.nn.sigmoid(
        jnp.sum(w2t * h1, axis=2, keepdims=True) + pp[0:C, 10:11])  # (BT, C, 1)

    # --- Fused channel shuffle: final channel 2c -> lanes [0, HW),
    #                            final channel 2c+1 -> lanes [HW, 2*HW).
    out_ref[:, :, 0:HW] = f_ref[:, 0:C, :]
    out_ref[:, :, HW:2 * HW] = y * sw


# ----------------------------------------------------------------------------
# Wrapper: only free reshapes around a single pallas_call.
# ----------------------------------------------------------------------------
def _tensorcores_per_chip():
    # v7x exposes 2 TensorCores per device; v4/v5e/v6e expose 1.
    try:
        kind = jax.devices()[0].device_kind.lower()
    except Exception:
        return 1
    return 2 if "7" in kind else 1


def pack_ccw_params(dw_w, dw_scale, dw_bias, w1, s1, b1, w2, s2, b2):
    """Fold eval-mode BN into the weights and pack everything into ONE slab.

    Layout (C+1 rows, 11 + 2*hid cols):
      rows 0..C-1 : [9 BN-scaled dw taps | dw bias | fc2 bias | fc2 w^T | fc1 w (scaled)]
      row  C      : [zeros ........................................... | fc1 bias      ]
    """
    C = dw_scale.shape[0]
    hid = w1.shape[1]
    taps = dw_w.reshape(9, C).T * dw_scale[:, None]               # (C, 9)
    w2t = (w2 * s2[None, :]).T                                    # (C, hid)
    w1s = w1 * s1[None, :]                                        # (C, hid)
    top = jnp.concatenate(
        [taps, dw_bias[:, None], b2[:, None], w2t, w1s], axis=1)  # (C, 11+2*hid)
    bot = jnp.concatenate(
        [jnp.zeros((1, 11 + hid), jnp.float32), b1[None, :]], axis=1)
    return jnp.concatenate([top, bot], axis=0)                    # (C+1, 11+2*hid)


def ccw_block_forward(feats, cr_weight, params):
    N, Cin, H, W = feats.shape
    C = Cin // 2                      # identity left branch: in_ch_l == out_ch_l
    hid = (params.shape[1] - 11) // 2
    Hc, Wc = cr_weight.shape[2], cr_weight.shape[3]
    HW, HcWc = H * W, Hc * Wc

    # Batch tiling: one big block per TensorCore (amortizes per-grid-step
    # overhead on single-TC v5e/v6e; keeps both TCs busy on v7x).
    n_blocks = max(1, min(N, _tensorcores_per_chip()))
    bt = -(-N // n_blocks)
    n_blocks = -(-N // bt)
    n_pad = n_blocks * bt

    feats_flat = feats.reshape(N, Cin, HW)            # free, contiguous reshape
    crw_flat = cr_weight.reshape(N, C, HcWc)          # free, contiguous reshape
    if n_pad != N:
        feats_flat = jnp.pad(feats_flat, ((0, n_pad - N), (0, 0), (0, 0)))
        crw_flat = jnp.pad(crw_flat, ((0, n_pad - N), (0, 0), (0, 0)))

    kernel = functools.partial(_ccw_kernel, H=H, W=W, Hc=Hc, Wc=Wc, C=C, hid=hid)

    cost = pl.CostEstimate(
        flops=int(n_pad * C * HW * (2 * HcWc + 24)),
        transcendentals=int(n_pad * (C + hid)),
        bytes_accessed=int(4 * (n_pad * HW * (Cin + 2 * C)
                                + n_pad * C * HcWc + params.size)),
    )

    out_flat = pl.pallas_call(
        kernel,
        out_shape=jax.ShapeDtypeStruct((n_pad, C, 2 * HW), jnp.float32),
        grid_spec=pltpu.PrefetchScalarGridSpec(
            num_scalar_prefetch=0,
            grid=(n_blocks,),
            in_specs=[
                pl.BlockSpec((bt, Cin, HW), lambda b: (b, 0, 0)),
                pl.BlockSpec((bt, C, HcWc), lambda b: (b, 0, 0)),
                pl.BlockSpec(params.shape, lambda b: (0, 0)),   # constant slab
            ],
            out_specs=pl.BlockSpec((bt, C, 2 * HW), lambda b: (b, 0, 0)),
        ),
        compiler_params=pltpu.CompilerParams(
            dimension_semantics=("parallel",)),   # batch across TCs on v7x
        cost_estimate=cost,
    )(feats_flat, crw_flat, params)

    # (N, C, 2, H, W) -> channel 2c+j; contiguous, hence a free reshape.
    return out_flat[:N].reshape(N, 2 * C, H, W)


# ----------------------------------------------------------------------------
# Pure-JAX reference (correctness check) and helpers.
# ----------------------------------------------------------------------------
def bn_fold(gamma, beta, mean, var, eps=1e-5):
    scale = gamma / jnp.sqrt(var + eps)
    bias = beta - mean * scale
    return scale, bias


def nearest_interp_nchw(x, size):
    H, W = size
    Hc, Wc = x.shape[2], x.shape[3]
    idx_h = (jnp.arange(H) * Hc) // H
    idx_w = (jnp.arange(W) * Wc) // W
    return x[:, :, idx_h, :][:, :, :, idx_w]


def channel_shuffle_nchw(x, groups=2):
    n, c, h, w = x.shape
    x = x.reshape(n, groups, c // groups, h, w)
    x = jnp.transpose(x, (0, 2, 1, 3, 4))
    return x.reshape(n, c, h, w)


def ccw_block_reference(feats, crw, params, split_ch):
    dw_w, dw_scale, dw_bias, w1, s1, b1, w2, s2, b2 = params
    in_ch_l, _ = split_ch
    fl = feats[:, :in_ch_l]
    fr = feats[:, in_ch_l:]
    H, W = fr.shape[2], fr.shape[3]
    crw_up = nearest_interp_nchw(crw, (H, W))

    x = jnp.transpose(fr * crw_up, (0, 2, 3, 1))
    C = x.shape[-1]
    w_hwio = dw_w.reshape(3, 3, 1, C)
    y = lax.conv_general_dilated(x, w_hwio, (1, 1), 'SAME',
                                 dimension_numbers=('NHWC', 'HWIO', 'NHWC'),
                                 feature_group_count=C)
    y = jnp.maximum(y * dw_scale.reshape(1, 1, 1, C) + dw_bias.reshape(1, 1, 1, C), 0.0)
    pooled = jnp.mean(y, axis=(1, 2))                      # (N, C)
    h1 = jnp.maximum(pooled @ w1 * s1 + b1, 0.0)
    sw = jax.nn.sigmoid(h1 @ w2 * s2 + b2)
    yr = y * sw[:, None, None, :]
    fr_out = jnp.transpose(yr, (0, 3, 1, 2))
    out = jnp.concatenate([fl, fr_out], axis=1)
    return channel_shuffle_nchw(out, 2)


# ----------------------------------------------------------------------------
if __name__ == "__main__":
    N = 2
    in_channels = out_channels = 32
    H = W = 16
    in_ch_l = in_channels // 2
    C_r = in_channels - in_ch_l            # 16
    hid = C_r // 8                         # 2

    key = jax.random.PRNGKey(0)
    ks = jax.random.split(key, 16)

    # inputs (NCHW, like PyTorch)
    feats = jax.random.normal(ks[0], (N, in_channels, H, W), jnp.float32)
    cr_weight = jax.random.uniform(ks[1], (N, C_r, H // 2, W // 2), jnp.float32)

    # depthwise 3x3 ConvBNAct parameters (weights stored as (9, C) taps)
    dw_w = (jax.random.normal(ks[2], (3, 3, C_r), jnp.float32) * 0.2).reshape(9, C_r)
    g_dw = 1.0 + 0.1 * jax.random.normal(ks[3], (C_r,), jnp.float32)
    be_dw = 0.1 * jax.random.normal(ks[4], (C_r,), jnp.float32)
    mu_dw = 0.1 * jax.random.normal(ks[5], (C_r,), jnp.float32)
    var_dw = jax.random.uniform(ks[6], (C_r,), jnp.float32, 0.5, 1.5)
    dw_scale, dw_bias = bn_fold(g_dw, be_dw, mu_dw, var_dw)

    # SpatialWeightModule: fc1 (C->hid) ConvBNAct(relu), fc2 (hid->C) ConvBNAct(sigmoid)
    w1 = jax.random.normal(ks[7], (C_r, hid), jnp.float32) * 0.3
    g1 = 1.0 + 0.1 * jax.random.normal(ks[8], (hid,), jnp.float32)
    be1 = 0.1 * jax.random.normal(ks[9], (hid,), jnp.float32)
    mu1 = 0.1 * jax.random.normal(ks[10], (hid,), jnp.float32)
    var1 = jax.random.uniform(ks[11], (hid,), jnp.float32, 0.5, 1.5)
    s1, b1 = bn_fold(g1, be1, mu1, var1)

    w2 = jax.random.normal(ks[12], (hid, C_r), jnp.float32) * 0.3
    g2 = 1.0 + 0.1 * jax.random.normal(ks[13], (C_r,), jnp.float32)
    be2 = 0.1 * jax.random.normal(ks[14], (C_r,), jnp.float32)
    mu2 = 0.1 * jax.random.normal(ks[15], (C_r,), jnp.float32)
    var2 = jax.random.uniform(jax.random.PRNGKey(123), (C_r,), jnp.float32, 0.5, 1.5)
    s2, b2 = bn_fold(g2, be2, mu2, var2)

    raw_params = (dw_w, dw_scale, dw_bias, w1, s1, b1, w2, s2, b2)
    params = pack_ccw_params(*raw_params)

    fwd = jax.jit(ccw_block_forward)
    out = jax.block_until_ready(fwd(feats, cr_weight, params))

    ref = jax.block_until_ready(
        ccw_block_reference(feats, cr_weight, raw_params, (in_ch_l, C_r)))
    np.testing.assert_allclose(np.asarray(out), np.asarray(ref), rtol=1e-4, atol=1e-4)
    assert out.shape == (N, out_channels, H, W)

    print("KERNEL_OK")
</pallas_src>

<mosaic_0001>
module attributes {stable_mosaic.version = 11 : i64} {
  func.func @_ccw_kernel(%arg0: i32, %arg1: memref<2x32x256xf32, #tpu.memory_space<vmem>>, %arg2: memref<2x16x64xf32, #tpu.memory_space<vmem>>, %arg3: memref<17x15xf32, #tpu.memory_space<vmem>>, %arg4: memref<2x16x512xf32, #tpu.memory_space<vmem>>) attributes {dimension_semantics = [#tpu.dimension_semantics<parallel>], iteration_bounds = array<i64: 1>, scalar_prefetch = 0 : i64, scratch_operands = 0 : i64, tpu.core_type = #tpu.core_type<tc>, window_params = [{transform_indices = @transform_0, window_bounds = array<i64: 2, 32, 256>}, {transform_indices = @transform_1, window_bounds = array<i64: 2, 16, 64>}, {pipeline_mode = #tpu.pipeline_mode<synchronous>, transform_indices = @transform_2, window_bounds = array<i64: 17, 15>}, {transform_indices = @transform_3, window_bounds = array<i64: 2, 16, 512>}]} {
    %c0 = arith.constant 0 : index
    %c0_0 = arith.constant 0 : index
    %0 = vector.load %arg3[%c0, %c0_0] : memref<17x15xf32, #tpu.memory_space<vmem>>, vector<17x15xf32>
    %1 = tpu.iota {dimensions = array<i32: 1>} : vector<1x256xi32>
    %c4_i32 = arith.constant 4 : i32
    %2 = vector.broadcast %c4_i32 : i32 to vector<1x256xi32>
    %3 = arith.shrsi %1, %2 : vector<1x256xi32>
    %c15_i32 = arith.constant 15 : i32
    %4 = vector.broadcast %c15_i32 : i32 to vector<1x256xi32>
    %5 = arith.andi %1, %4 : vector<1x256xi32>
    %c8_i32 = arith.constant 8 : i32
    %6 = vector.broadcast %c8_i32 : i32 to vector<1x256xi32>
    %7 = arith.muli %3, %6 : vector<1x256xi32>
    %c4_i32_1 = arith.constant 4 : i32
    %8 = vector.broadcast %c4_i32_1 : i32 to vector<1x256xi32>
    %9 = arith.shrsi %7, %8 : vector<1x256xi32>
    %c8_i32_2 = arith.constant 8 : i32
    %10 = vector.broadcast %c8_i32_2 : i32 to vector<1x256xi32>
    %11 = arith.muli %9, %10 : vector<1x256xi32>
    %c8_i32_3 = arith.constant 8 : i32
    %12 = vector.broadcast %c8_i32_3 : i32 to vector<1x256xi32>
    %13 = arith.muli %5, %12 : vector<1x256xi32>
    %c4_i32_4 = arith.constant 4 : i32
    %14 = vector.broadcast %c4_i32_4 : i32 to vector<1x256xi32>
    %15 = arith.shrsi %13, %14 : vector<1x256xi32>
    %16 = arith.addi %11, %15 : vector<1x256xi32>
    %17 = tpu.iota {dimensions = array<i32: 0>} : vector<64x1xi32>
    %18 = vector.broadcast %17 : vector<64x1xi32> to vector<64x256xi32>
    %19 = vector.broadcast %16 : vector<1x256xi32> to vector<64x256xi32>
    %20 = arith.cmpi eq, %18, %19 : vector<64x256xi32>
    %cst = arith.constant 1.000000e+00 : f32
    %cst_5 = arith.constant 0.000000e+00 : f32
    %21 = vector.broadcast %cst : f32 to vector<64x256xf32>
    %22 = vector.broadcast %cst_5 : f32 to vector<64x256xf32>
    %23 = arith.select %20, %21, %22 : vector<64x256xi1>, vector<64x256xf32>
    %c0_6 = arith.constant 0 : index
    %c0_7 = arith.constant 0 : index
    %c0_8 = arith.constant 0 : index
    %24 = vector.load %arg2[%c0_6, %c0_7, %c0_8] : memref<2x16x64xf32, #tpu.memory_space<vmem>>, vector<2x16x64xf32>
    %25 = vector.shape_cast %24 : vector<2x16x64xf32> to vector<32x64xf32>
    %cst_9 = arith.constant dense<0.000000e+00> : vector<32x256xf32>
    %26 = tpu.matmul %25, %23, %cst_9 {dimension_numbers = #tpu.dot_dimension_numbers<[1], [0], [0], [1], [0, 0, 1, 1], [], []>, precision = #tpu.contract_precision<fp32>} : vector<32x64xf32>, vector<64x256xf32>, vector<32x256xf32> -> vector<32x256xf32>
    %27 = vector.shape_cast %26 : vector<32x256xf32> to vector<2x16x256xf32>
    %c0_10 = arith.constant 0 : index
    %c16 = arith.constant 16 : index
    %c0_11 = arith.constant 0 : index
    %28 = vector.load %arg1[%c0_10, %c16, %c0_11] : memref<2x32x256xf32, #tpu.memory_space<vmem>>, vector<2x16x256xf32>
    %29 = arith.mulf %28, %27 : vector<2x16x256xf32>
    %30 = tpu.iota {dimensions = array<i32: 2>} : vector<1x1x256xi32>
    %c15_i32_12 = arith.constant 15 : i32
    %31 = vector.broadcast %c15_i32_12 : i32 to vector<1x1x256xi32>
    %32 = arith.andi %30, %31 : vector<1x1x256xi32>
    %c16_i32 = arith.constant 16 : i32
    %33 = vector.broadcast %c16_i32 : i32 to vector<1x1x256xi32>
    %34 = arith.cmpi sge, %30, %33 : vector<1x1x256xi32>
    %35 = vector.shape_cast %29 : vector<2x16x256xf32> to vector<32x256xf32>
    %c16_i32_13 = arith.constant 16 : i32
    %36 = tpu.dynamic_rotate %35 by %c16_i32_13 dim 1 : vector<32x256xf32>, i32 -> vector<32x256xf32>
    %37 = vector.shape_cast %36 : vector<32x256xf32> to vector<2x16x256xf32>
    %cst_14 = arith.constant 0.000000e+00 : f32
    %38 = vector.shape_cast %34 : vector<1x1x256xi1> to vector<1x1x256xi1>
    %39 = vector.broadcast %38 : vector<1x1x256xi1> to vector<2x16x256xi1>
    %40 = vector.broadcast %cst_14 : f32 to vector<2x16x256xf32>
    %41 = arith.select %39, %37, %40 : vector<2x16x256xi1>, vector<2x16x256xf32>
    %c240_i32 = arith.constant 240 : i32
    %42 = vector.broadcast %c240_i32 : i32 to vector<1x1x256xi32>
    %43 = arith.cmpi slt, %30, %42 : vector<1x1x256xi32>
    %44 = vector.shape_cast %29 : vector<2x16x256xf32> to vector<32x256xf32>
    %c240_i32_15 = arith.constant 240 : i32
    %45 = tpu.dynamic_rotate %44 by %c240_i32_15 dim 1 : vector<32x256xf32>, i32 -> vector<32x256xf32>
    %46 = vector.shape_cast %45 : vector<32x256xf32> to vector<2x16x256xf32>
    %cst_16 = arith.constant 0.000000e+00 : f32
    %47 = vector.shape_cast %43 : vector<1x1x256xi1> to vector<1x1x256xi1>
    %48 = vector.broadcast %47 : vector<1x1x256xi1> to vector<2x16x256xi1>
    %49 = vector.broadcast %cst_16 : f32 to vector<2x16x256xf32>
    %50 = arith.select %48, %46, %49 : vector<2x16x256xi1>, vector<2x16x256xf32>
    %51 = vector.extract_strided_slice %0 {offsets = [0, 0], sizes = [16, 1], strides = [1, 1]} : vector<17x15xf32> to vector<16x1xf32>
    %52 = vector.shape_cast %51 : vector<16x1xf32> to vector<1x16x1xf32>
    %53 = vector.broadcast %52 : vector<1x16x1xf32> to vector<2x16x256xf32>
    %54 = arith.mulf %41, %53 : vector<2x16x256xf32>
    %55 = vector.extract_strided_slice %0 {offsets = [0, 3], sizes = [16, 1], strides = [1, 1]} : vector<17x15xf32> to vector<16x1xf32>
    %56 = vector.shape_cast %55 : vector<16x1xf32> to vector<1x16x1xf32>
    %57 = vector.broadcast %56 : vector<1x16x1xf32> to vector<2x16x256xf32>
    %58 = arith.mulf %29, %57 : vector<2x16x256xf32>
    %59 = arith.addf %54, %58 : vector<2x16x256xf32>
    %60 = vector.extract_strided_slice %0 {offsets = [0, 6], sizes = [16, 1], strides = [1, 1]} : vector<17x15xf32> to vector<16x1xf32>
    %61 = vector.shape_cast %60 : vector<16x1xf32> to vector<1x16x1xf32>
    %62 = vector.broadcast %61 : vector<1x16x1xf32> to vector<2x16x256xf32>
    %63 = arith.mulf %50, %62 : vector<2x16x256xf32>
    %64 = arith.addf %59, %63 : vector<2x16x256xf32>
    %65 = vector.extract_strided_slice %0 {offsets = [0, 1], sizes = [16, 1], strides = [1, 1]} : vector<17x15xf32> to vector<16x1xf32>
    %66 = vector.shape_cast %65 : vector<16x1xf32> to vector<1x16x1xf32>
    %67 = vector.broadcast %66 : vector<1x16x1xf32> to vector<2x16x256xf32>
    %68 = arith.mulf %41, %67 : vector<2x16x256xf32>
    %69 = vector.extract_strided_slice %0 {offsets = [0, 4], sizes = [16, 1], strides = [1, 1]} : vector<17x15xf32> to vector<16x1xf32>
    %70 = vector.shape_cast %69 : vector<16x1xf32> to vector<1x16x1xf32>
    %71 = vector.broadcast %70 : vector<1x16x1xf32> to vector<2x16x256xf32>
    %72 = arith.mulf %29, %71 : vector<2x16x256xf32>
    %73 = arith.addf %68, %72 : vector<2x16x256xf32>
    %74 = vector.extract_strided_slice %0 {offsets = [0, 7], sizes = [16, 1], strides = [1, 1]} : vector<17x15xf32> to vector<16x1xf32>
    %75 = vector.shape_cast %74 : vector<16x1xf32> to vector<1x16x1xf32>
    %76 = vector.broadcast %75 : vector<1x16x1xf32> to vector<2x16x256xf32>
    %77 = arith.mulf %50, %76 : vector<2x16x256xf32>
    %78 = arith.addf %73, %77 : vector<2x16x256xf32>
    %79 = vector.extract_strided_slice %0 {offsets = [0, 2], sizes = [16, 1], strides = [1, 1]} : vector<17x15xf32> to vector<16x1xf32>
    %80 = vector.shape_cast %79 : vector<16x1xf32> to vector<1x16x1xf32>
    %81 = vector.broadcast %80 : vector<1x16x1xf32> to vector<2x16x256xf32>
    %82 = arith.mulf %41, %81 : vector<2x16x256xf32>
    %83 = vector.extract_strided_slice %0 {offsets = [0, 5], sizes = [16, 1], strides = [1, 1]} : vector<17x15xf32> to vector<16x1xf32>
    %84 = vector.shape_cast %83 : vector<16x1xf32> to vector<1x16x1xf32>
    %85 = vector.broadcast %84 : vector<1x16x1xf32> to vector<2x16x256xf32>
    %86 = arith.mulf %29, %85 : vector<2x16x256xf32>
    %87 = arith.addf %82, %86 : vector<2x16x256xf32>
    %88 = vector.extract_strided_slice %0 {offsets = [0, 8], sizes = [16, 1], strides = [1, 1]} : vector<17x15xf32> to vector<16x1xf32>
    %89 = vector.shape_cast %88 : vector<16x1xf32> to vector<1x16x1xf32>
    %90 = vector.broadcast %89 : vector<1x16x1xf32> to vector<2x16x256xf32>
    %91 = arith.mulf %50, %90 : vector<2x16x256xf32>
    %92 = arith.addf %87, %91 : vector<2x16x256xf32>
    %c1_i32 = arith.constant 1 : i32
    %93 = vector.broadcast %c1_i32 : i32 to vector<1x1x256xi32>
    %94 = arith.cmpi sge, %32, %93 : vector<1x1x256xi32>
    %95 = vector.shape_cast %64 : vector<2x16x256xf32> to vector<32x256xf32>
    %c1_i32_17 = arith.constant 1 : i32
    %96 = tpu.dynamic_rotate %95 by %c1_i32_17 dim 1 : vector<32x256xf32>, i32 -> vector<32x256xf32>
    %97 = vector.shape_cast %96 : vector<32x256xf32> to vector<2x16x256xf32>
    %cst_18 = arith.constant 0.000000e+00 : f32
    %98 = vector.shape_cast %94 : vector<1x1x256xi1> to vector<1x1x256xi1>
    %99 = vector.broadcast %98 : vector<1x1x256xi1> to vector<2x16x256xi1>
    %100 = vector.broadcast %cst_18 : f32 to vector<2x16x256xf32>
    %101 = arith.select %99, %97, %100 : vector<2x16x256xi1>, vector<2x16x256xf32>
    %102 = arith.addf %78, %101 : vector<2x16x256xf32>
    %c14_i32 = arith.constant 14 : i32
    %103 = vector.broadcast %c14_i32 : i32 to vector<1x1x256xi32>
    %104 = arith.cmpi sle, %32, %103 : vector<1x1x256xi32>
    %105 = vector.shape_cast %92 : vector<2x16x256xf32> to vector<32x256xf32>
    %c255_i32 = arith.constant 255 : i32
    %106 = tpu.dynamic_rotate %105 by %c255_i32 dim 1 : vector<32x256xf32>, i32 -> vector<32x256xf32>
    %107 = vector.shape_cast %106 : vector<32x256xf32> to vector<2x16x256xf32>
    %cst_19 = arith.constant 0.000000e+00 : f32
    %108 = vector.shape_cast %104 : vector<1x1x256xi1> to vector<1x1x256xi1>
    %109 = vector.broadcast %108 : vector<1x1x256xi1> to vector<2x16x256xi1>
    %110 = vector.broadcast %cst_19 : f32 to vector<2x16x256xf32>
    %111 = arith.select %109, %107, %110 : vector<2x16x256xi1>, vector<2x16x256xf32>
    %112 = arith.addf %102, %111 : vector<2x16x256xf32>
    %113 = vector.extract_strided_slice %0 {offsets = [0, 9], sizes = [16, 1], strides = [1, 1]} : vector<17x15xf32> to vector<16x1xf32>
    %114 = vector.shape_cast %113 : vector<16x1xf32> to vector<1x16x1xf32>
    %115 = vector.broadcast %114 : vector<1x16x1xf32> to vector<2x16x256xf32>
    %116 = arith.addf %112, %115 : vector<2x16x256xf32>
    %cst_20 = arith.constant 0.000000e+00 : f32
    %117 = vector.broadcast %cst_20 : f32 to vector<2x16x256xf32>
    %118 = arith.maximumf %116, %117 : vector<2x16x256xf32>
    %cst_21 = arith.constant dense<0.000000e+00> : vector<2x16xf32>
    %119 = vector.multi_reduction <add>, %118, %cst_21 [2] : vector<2x16x256xf32> to vector<2x16xf32>
    %120 = vector.shape_cast %119 : vector<2x16xf32> to vector<2x16x1xf32>
    %cst_22 = arith.constant 3.906250e-03 : f32
    %121 = vector.broadcast %cst_22 : f32 to vector<2x16x1xf32>
    %122 = arith.mulf %120, %121 : vector<2x16x1xf32>
    %123 = vector.extract_strided_slice %0 {offsets = [0, 13], sizes = [16, 2], strides = [1, 1]} : vector<17x15xf32> to vector<16x2xf32>
    %124 = vector.extract_strided_slice %0 {offsets = [16, 13], sizes = [1, 2], strides = [1, 1]} : vector<17x15xf32> to vector<1x2xf32>
    %125 = vector.shape_cast %123 : vector<16x2xf32> to vector<1x16x2xf32>
    %126 = vector.broadcast %122 : vector<2x16x1xf32> to vector<2x16x2xf32>
    %127 = vector.broadcast %125 : vector<1x16x2xf32> to vector<2x16x2xf32>
    %128 = arith.mulf %126, %127 : vector<2x16x2xf32>
    %cst_23 = arith.constant dense<0.000000e+00> : vector<2x2xf32>
    %129 = vector.multi_reduction <add>, %128, %cst_23 [1] : vector<2x16x2xf32> to vector<2x2xf32>
    %130 = vector.shape_cast %129 : vector<2x2xf32> to vector<2x1x2xf32>
    %131 = vector.shape_cast %124 : vector<1x2xf32> to vector<1x1x2xf32>
    %132 = vector.broadcast %131 : vector<1x1x2xf32> to vector<2x1x2xf32>
    %133 = arith.addf %130, %132 : vector<2x1x2xf32>
    %cst_24 = arith.constant 0.000000e+00 : f32
    %134 = vector.broadcast %cst_24 : f32 to vector<2x1x2xf32>
    %135 = arith.maximumf %133, %134 : vector<2x1x2xf32>
    %136 = vector.extract_strided_slice %0 {offsets = [0, 11], sizes = [16, 2], strides = [1, 1]} : vector<17x15xf32> to vector<16x2xf32>
    %137 = vector.shape_cast %136 : vector<16x2xf32> to vector<1x16x2xf32>
    %138 = vector.broadcast %137 : vector<1x16x2xf32> to vector<2x16x2xf32>
    %139 = vector.broadcast %135 : vector<2x1x2xf32> to vector<2x16x2xf32>
    %140 = arith.mulf %138, %139 : vector<2x16x2xf32>
    %cst_25 = arith.constant dense<0.000000e+00> : vector<2x16xf32>
    %141 = vector.multi_reduction <add>, %140, %cst_25 [2] : vector<2x16x2xf32> to vector<2x16xf32>
    %142 = vector.shape_cast %141 : vector<2x16xf32> to vector<2x16x1xf32>
    %143 = vector.extract_strided_slice %0 {offsets = [0, 10], sizes = [16, 1], strides = [1, 1]} : vector<17x15xf32> to vector<16x1xf32>
    %144 = vector.shape_cast %143 : vector<16x1xf32> to vector<1x16x1xf32>
    %145 = vector.broadcast %144 : vector<1x16x1xf32> to vector<2x16x1xf32>
    %146 = arith.addf %142, %145 : vector<2x16x1xf32>
    %147 = arith.negf %146 : vector<2x16x1xf32>
    %148 = math.exp %147 : vector<2x16x1xf32>
    %cst_26 = arith.constant 1.000000e+00 : f32
    %149 = vector.broadcast %cst_26 : f32 to vector<2x16x1xf32>
    %150 = arith.addf %149, %148 : vector<2x16x1xf32>
    %151 = arith.divf %149, %150 : vector<2x16x1xf32>
    %c0_27 = arith.constant 0 : index
    %c0_28 = arith.constant 0 : index
    %c0_29 = arith.constant 0 : index
    %152 = vector.load %arg1[%c0_27, %c0_28, %c0_29] : memref<2x32x256xf32, #tpu.memory_space<vmem>>, vector<2x16x256xf32>
    %c0_30 = arith.constant 0 : index
    %c0_31 = arith.constant 0 : index
    %c0_32 = arith.constant 0 : index
    %153 = vector.load %arg4[%c0_30, %c0_31, %c0_32] : memref<2x16x512xf32, #tpu.memory_space<vmem>>, vector<2x16x256xf32>
    tpu.vector_store %arg4[%c0_30, %c0_31, %c0_32], %152 {strides = array<i32>} : memref<2x16x512xf32, #tpu.memory_space<vmem>>, vector<2x16x256xf32>,
    %154 = vector.broadcast %151 : vector<2x16x1xf32> to vector<2x16x256xf32>
    %155 = arith.mulf %118, %154 : vector<2x16x256xf32>
    %c0_33 = arith.constant 0 : index
    %c0_34 = arith.constant 0 : index
    %c256 = arith.constant 256 : index
    %156 = vector.load %arg4[%c0_33, %c0_34, %c256] : memref<2x16x512xf32, #tpu.memory_space<vmem>>, vector<2x16x256xf32>
    tpu.vector_store %arg4[%c0_33, %c0_34, %c256], %155 {strides = array<i32>} : memref<2x16x512xf32, #tpu.memory_space<vmem>>, vector<2x16x256xf32>,
    return
  }
  func.func @transform_0(%arg0: i32) -> (i32, i32, i32) {
    %c0_i32 = arith.constant 0 : i32
    %c0_i32_0 = arith.constant 0 : i32
    %c0_i32_1 = arith.constant 0 : i32
    return %arg0, %c0_i32, %c0_i32_0 : i32, i32, i32
  }
  func.func @transform_1(%arg0: i32) -> (i32, i32, i32) {
    %c0_i32 = arith.constant 0 : i32
    %c0_i32_0 = arith.constant 0 : i32
    %c0_i32_1 = arith.constant 0 : i32
    return %arg0, %c0_i32, %c0_i32_0 : i32, i32, i32
  }
  func.func @transform_2(%arg0: i32) -> (i32, i32) {
    %c0_i32 = arith.constant 0 : i32
    %c0_i32_0 = arith.constant 0 : i32
    %c0_i32_1 = arith.constant 0 : i32
    return %c0_i32, %c0_i32_0 : i32, i32
  }
  func.func @transform_3(%arg0: i32) -> (i32, i32, i32) {
    %c0_i32 = arith.constant 0 : i32
    %c0_i32_0 = arith.constant 0 : i32
    %c0_i32_1 = arith.constant 0 : i32
    return %arg0, %c0_i32, %c0_i32_0 : i32, i32, i32
  }
}

</mosaic_0001>

<llo_original>
// kernel: ccw_block_forward.1
$region0: #{ccw_block_forward.1}
  #allocation0 [shape = 'u32[]', space=smem, size = 0x4, offset = 0x4, fixed_abs, tag = 'smem constant byte address 0x4 - core index']
  #allocation1 [shape = 'u32[144,128]{1,0:T(1,128)}', space=vmem, size = 0x12000, scoped, tag = 'internal scratch']
  %s0 = inlined_call_operand.vmem [shape: f32[2,32,256], index: 0, kind: input, shape index: {}]
  %s1 = inlined_call_operand.vmem [shape: f32[2,16,64], index: 1, kind: input, shape index: {}]
  %s2 = inlined_call_operand.vmem [shape: f32[17,15], index: 2, kind: input, shape index: {}]
  %s3 = inlined_call_operand.vmem [shape: f32[2,16,512], index: 3, kind: output, shape index: {}]
  %s4 = sld [smem:[#allocation0]]
  $region22: #{ccw_block_forward.1} parent=0
    _
  %s6 = ssub.s32 1, %s4
  %s7 = scalar_select 0, %s6, %s4
  // Predicated region
  $region2: #{ccw_block_forward.1} parent=0 // pred_check
    _
  $region3: #{ccw_block_forward.1} parent=0 // pred_check_branch
    %9 = sbr.rel (0) target = $region5
  $region4: #{ccw_block_forward.1} parent=0 // pred_region
    _
  $region5: #{ccw_block_forward.1} parent=0 // pred_fallthru
    _
  // Predicated region
  $region6: #{ccw_block_forward.1} parent=0 // pred_check
    _
  $region7: #{ccw_block_forward.1} parent=0 // pred_check_branch
    %11 = sbr.rel (0) target = $region9
  $region8: #{ccw_block_forward.1} parent=0 // pred_region
    _
  $region9: #{ccw_block_forward.1} parent=0 // pred_fallthru
    _
  // Predicated region
  $region10: #{ccw_block_forward.1} parent=0 // pred_check
    _
  $region11: #{ccw_block_forward.1} parent=0 // pred_check_branch
    %13 = sbr.rel (0) target = $region13
  $region12: #{ccw_block_forward.1} parent=0 // pred_region
    _
  $region13: #{ccw_block_forward.1} parent=0 // pred_fallthru
    _
  %v14 = vld [vmem:[%s2] sm:$0xff]
  %v15 = vld [vmem:[%s2 + $0x8] sm:$0xff]
  %v16 = vld [vmem:[%s2 + $0x10] sm:$0x1]
  %v17 = vlaneseq
  %v18 = vand.u32 %v17, 127
  %v19 = vadd.s32 %v18, 128
  %v20 = vshra.s32 %v18, 4
  %v21 = vshra.s32 %v19, 4
  %v22 = vand.u32 %v18, 15
  %v23 = vand.u32 %v19, 15
  %v24 = vmul.u32 %v20, 8
  %v25 = vmul.u32 %v21, 8
  %v26 = vshra.s32 %v24, 4
  %v27 = vshra.s32 %v25, 4
  %v28 = vmul.u32 %v26, 8
  %v29 = vmul.u32 %v27, 8
  %v30 = vmul.u32 %v22, 8
  %v31 = vmul.u32 %v23, 8
  %v32 = vshra.s32 %v30, 4
  %v33 = vshra.s32 %v31, 4
  %v34 = vadd.s32 %v28, %v32
  %v35 = vadd.s32 %v29, %v33
  %v36 = vlaneseq
  %v37 = vshrl.u32 %v36, 7
  %v38 = vadd.s32 %v37, 8
  %v39 = vadd.s32 %v37, 16
  %v40 = vadd.s32 %v37, 24
  %v41 = vadd.s32 %v37, 32
  %v42 = vadd.s32 %v37, 40
  %v43 = vadd.s32 %v37, 48
  %v44 = vadd.s32 %v37, 56
  %vm45 = vcmp.eq.s32.totalorder %v37, %v34
  %vm46 = vcmp.eq.s32.totalorder %v37, %v35
  %vm47 = vcmp.eq.s32.totalorder %v38, %v34
  %vm48 = vcmp.eq.s32.totalorder %v38, %v35
  %vm49 = vcmp.eq.s32.totalorder %v39, %v34
  %vm50 = vcmp.eq.s32.totalorder %v39, %v35
  %vm51 = vcmp.eq.s32.totalorder %v40, %v34
  %vm52 = vcmp.eq.s32.totalorder %v40, %v35
  %vm53 = vcmp.eq.s32.totalorder %v41, %v34
  %vm54 = vcmp.eq.s32.totalorder %v41, %v35
  %vm55 = vcmp.eq.s32.totalorder %v42, %v34
  %vm56 = vcmp.eq.s32.totalorder %v42, %v35
  %vm57 = vcmp.eq.s32.totalorder %v43, %v34
  %vm58 = vcmp.eq.s32.totalorder %v43, %v35
  %vm59 = vcmp.eq.s32.totalorder %v44, %v34
  %vm60 = vcmp.eq.s32.totalorder %v44, %v35
  %v61 = vsel %vm45, 1.0, 0.0
  %v62 = vsel %vm46, 1.0, 0.0
  %v63 = vsel %vm47, 1.0, 0.0
  %v64 = vsel %vm48, 1.0, 0.0
  %v65 = vsel %vm49, 1.0, 0.0
  %v66 = vsel %vm50, 1.0, 0.0
  %v67 = vsel %vm51, 1.0, 0.0
  %v68 = vsel %vm52, 1.0, 0.0
  %v69 = vsel %vm53, 1.0, 0.0
  %v70 = vsel %vm54, 1.0, 0.0
  %v71 = vsel %vm55, 1.0, 0.0
  %v72 = vsel %vm56, 1.0, 0.0
  %v73 = vsel %vm57, 1.0, 0.0
  %v74 = vsel %vm58, 1.0, 0.0
  %v75 = vsel %vm59, 1.0, 0.0
  %v76 = vsel %vm60, 1.0, 0.0
  %v77 = vld [vmem:[%s1] sm:$0xff]
  %v78 = vld [vmem:[%s1 + $0x8] sm:$0xff]
  %v79 = vld [vmem:[%s1 + $0x10] sm:$0xff]
  %v80 = vld [vmem:[%s1 + $0x18] sm:$0xff]
  %vm81 = vcmask 523264
  %v83 = vsel %vm81, %v77, 0
  %v86 = vsel %vm81, %v78, 0
  %v89 = vsel %vm81, %v79, 0
  %v92 = vsel %vm81, %v80, 0
  %94 = vmatprep.subr.mxu0 %v62
  %95 = vmatpush1.msra.mxu0 %v61
  %96 = vmatprep.subr.mxu0 %v64
  %97 = vmatpush1.msra.mxu0 %v63
  %98 = vmatprep.subr.mxu0 %v66
  %99 = vmatpush1.msra.mxu0 %v65
  %100 = vmatprep.subr.mxu0 %v68
  %101 = vmatpush1.msra.mxu0 %v67
  %102 = vmatprep.subr.mxu0 %v70
  %103 = vmatpush1.msra.mxu0 %v69
  %104 = vmatprep.subr.mxu0 %v72
  %105 = vmatpush1.msra.mxu0 %v71
  %106 = vmatprep.subr.mxu0 %v74
  %107 = vmatpush1.msra.mxu0 %v73
  %108 = vmatprep.subr.mxu0 %v76
  %109 = vmatpush1.msra.mxu0 %v75
  %110 = vmatprep.subr.mxu0 0.0
  %111 = vmatpush1.msra.mxu0 0.0
  %112 = vmatprep.subr.mxu0 0.0
  %113 = vmatpush1.msra.mxu0 0.0
  %114 = vmatprep.subr.mxu0 0.0
  %115 = vmatpush1.msra.mxu0 0.0
  %116 = vmatprep.subr.mxu0 0.0
  %117 = vmatpush1.msra.mxu0 0.0
  %118 = vmatprep.subr.mxu0 0.0
  %119 = vmatpush1.msra.mxu0 0.0
  %120 = vmatprep.subr.mxu0 0.0
  %121 = vmatpush1.msra.mxu0 0.0
  %122 = vmatprep.subr.mxu0 0.0
  %123 = vmatpush1.msra.mxu0 0.0
  %124 = vmatprep.subr.mxu0 0.0
  %125 = vmatpush1.msra.mxu0 0.0
  %126 = vmatprep.subr.mxu0 0.0
  %127 = vmatpush1.msra.mxu0 0.0
  %128 = vmatprep.subr.mxu0 0.0
  %129 = vmatpush1.msra.mxu0 0.0
  %130 = vmatprep.subr.mxu0 0.0
  %131 = vmatpush1.msra.mxu0 0.0
  %132 = vmatprep.subr.mxu0 0.0
  %133 = vmatpush1.msra.mxu0 0.0
  %134 = vmatprep.subr.mxu0 0.0
  %135 = vmatpush1.msra.mxu0 0.0
  %136 = vmatprep.subr.mxu0 0.0
  %137 = vmatpush1.msra.mxu0 0.0
  %138 = vmatprep.subr.mxu0 0.0
  %139 = vmatpush1.msra.mxu0 0.0
  %140 = vmatprep.subr.mxu0 0.0
  %141 = vmatpush1.msra.mxu0 0.0
  %142 = vmatprep.subr.mxu0 0.0
  %143 = vmatpush1.msra.mxu0 0.0
  %144 = vmatprep.subr.mxu0 0.0
  %145 = vmatpush1.msra.mxu0 0.0
  %146 = vmatprep.subr.mxu0 0.0
  %147 = vmatpush1.msra.mxu0 0.0
  %148 = vmatprep.subr.mxu0 0.0
  %149 = vmatpush1.msra.mxu0 0.0
  %150 = vmatprep.subr.mxu0 0.0
  %151 = vmatpush1.msra.mxu0 0.0
  %152 = vmatprep.subr.mxu0 0.0
  %153 = vmatpush1.msra.mxu0 0.0
  %154 = vmatprep.subr.mxu0 0.0
  %155 = vmatpush1.msra.mxu0 0.0
  %156 = vmatprep.subr.mxu0 0.0
  %157 = vmatpush1.msra.mxu0 0.0
  %158 = vmatprep.mubr.f32.mxu0 0.0
  %v159 = vand.u32 %v83, 4294901760
  %v160 = vsub.f32 %v83, %v159
  %v161 = vand.u32 %v160, 4294901760
  %v162 = vsub.f32 %v160, %v161
  %v163 = vand.u32 %v162, 4294901760
  %164 = vmatmul.mubr.f32.gmra.mrb[0].mxu0 %v163
  %v165 = vpop.f32.mrb[0].mxu0
  %v166 = vadd.f32 0.0, %v165
  %v167 = vpop.f32.mrb[0].mxu0
  %v168 = vadd.f32 0.0, %v167
  %169 = vmatprep.mubr.f32.mxu0 0.0
  %v170 = vand.u32 %v86, 4294901760
  %v171 = vsub.f32 %v86, %v170
  %v172 = vand.u32 %v171, 4294901760
  %v173 = vsub.f32 %v171, %v172
  %v174 = vand.u32 %v173, 4294901760
  %175 = vmatmul.mubr.f32.gmra.mrb[0].mxu0 %v174
  %v176 = vpop.f32.mrb[0].mxu0
  %v177 = vadd.f32 0.0, %v176
  %v178 = vpop.f32.mrb[0].mxu0
  %v179 = vadd.f32 0.0, %v178
  %180 = vmatprep.mubr.f32.mxu0 0.0
  %v181 = vand.u32 %v89, 4294901760
  %v182 = vsub.f32 %v89, %v181
  %v183 = vand.u32 %v182, 4294901760
  %v184 = vsub.f32 %v182, %v183
  %v185 = vand.u32 %v184, 4294901760
  %186 = vmatmul.mubr.f32.gmra.mrb[0].mxu0 %v185
  %v187 = vpop.f32.mrb[0].mxu0
  %v188 = vadd.f32 0.0, %v187
  %v189 = vpop.f32.mrb[0].mxu0
  %v190 = vadd.f32 0.0, %v189
  %191 = vmatprep.mubr.f32.mxu0 0.0
  %v192 = vand.u32 %v92, 4294901760
  %v193 = vsub.f32 %v92, %v192
  %v194 = vand.u32 %v193, 4294901760
  %v195 = vsub.f32 %v193, %v194
  %v196 = vand.u32 %v195, 4294901760
  %197 = vmatmul.mubr.f32.gmra.mrb[0].mxu0 %v196
  %v198 = vpop.f32.mrb[0].mxu0
  %v199 = vadd.f32 0.0, %v198
  %v200 = vpop.f32.mrb[0].mxu0
  %v201 = vadd.f32 0.0, %v200
  %202 = vdwg.mxu0
  %v203 = vsub.f32 %v62, %v62
  %v204 = vand.u32 %v203, 4294901760
  %v205 = vsub.f32 %v203, %v204
  %v206 = vand.u32 %v205, 4294901760
  %207 = vmatprep.subr.mxu0 %v206
  %v208 = vsub.f32 %v61, %v61
  %v209 = vand.u32 %v208, 4294901760
  %v210 = vsub.f32 %v208, %v209
  %v211 = vand.u32 %v210, 4294901760
  %212 = vmatpush1.msra.mxu0 %v211
  %v213 = vsub.f32 %v64, %v64
  %v214 = vand.u32 %v213, 4294901760
  %v215 = vsub.f32 %v213, %v214
  %v216 = vand.u32 %v215, 4294901760
  %217 = vmatprep.subr.mxu0 %v216
  %v218 = vsub.f32 %v63, %v63
  %v219 = vand.u32 %v218, 4294901760
  %v220 = vsub.f32 %v218, %v219
  %v221 = vand.u32 %v220, 4294901760
  %222 = vmatpush1.msra.mxu0 %v221
  %v223 = vsub.f32 %v66, %v66
  %v224 = vand.u32 %v223, 4294901760
  %v225 = vsub.f32 %v223, %v224
  %v226 = vand.u32 %v225, 4294901760
  %227 = vmatprep.subr.mxu0 %v226
  %v228 = vsub.f32 %v65, %v65
  %v229 = vand.u32 %v228, 4294901760
  %v230 = vsub.f32 %v228, %v229
  %v231 = vand.u32 %v230, 4294901760
  %232 = vmatpush1.msra.mxu0 %v231
  %v233 = vsub.f32 %v68, %v68
  %v234 = vand.u32 %v233, 4294901760
  %v235 = vsub.f32 %v233, %v234
  %v236 = vand.u32 %v235, 4294901760
  %237 = vmatprep.subr.mxu0 %v236
  %v238 = vsub.f32 %v67, %v67
  %v239 = vand.u32 %v238, 4294901760
  %v240 = vsub.f32 %v238, %v239
  %v241 = vand.u32 %v240, 4294901760
  %242 = vmatpush1.msra.mxu0 %v241
  %v243 = vsub.f32 %v70, %v70
  %v244 = vand.u32 %v243, 4294901760
  %v245 = vsub.f32 %v243, %v244
  %v246 = vand.u32 %v245, 4294901760
  %247 = vmatprep.subr.mxu0 %v246
  %v248 = vsub.f32 %v69, %v69
  %v249 = vand.u32 %v248, 4294901760
  %v250 = vsub.f32 %v248, %v249
  %v251 = vand.u32 %v250, 4294901760
  %252 = vmatpush1.msra.mxu0 %v251
  %v253 = vsub.f32 %v72, %v72
  %v254 = vand.u32 %v253, 4294901760
  %v255 = vsub.f32 %v253, %v254
  %v256 = vand.u32 %v255, 4294901760
  %257 = vmatprep.subr.mxu0 %v256
  %v258 = vsub.f32 %v71, %v71
  %v259 = vand.u32 %v258, 4294901760
  %v260 = vsub.f32 %v258, %v259
  %v261 = vand.u32 %v260, 4294901760
  %262 = vmatpush1.msra.mxu0 %v261
  %v263 = vsub.f32 %v74, %v74
  %v264 = vand.u32 %v263, 4294901760
  %v265 = vsub.f32 %v263, %v264
  %v266 = vand.u32 %v265, 4294901760
  %267 = vmatprep.subr.mxu0 %v266
  %v268 = vsub.f32 %v73, %v73
  %v269 = vand.u32 %v268, 4294901760
  %v270 = vsub.f32 %v268, %v269
  %v271 = vand.u32 %v270, 4294901760
  %272 = vmatpush1.msra.mxu0 %v271
  %v273 = vsub.f32 %v76, %v76
  %v274 = vand.u32 %v273, 4294901760
  %v275 = vsub.f32 %v273, %v274
  %v276 = vand.u32 %v275, 4294901760
  %277 = vmatprep.subr.mxu0 %v276
  %v278 = vsub.f32 %v75, %v75
  %v279 = vand.u32 %v278, 4294901760
  %v280 = vsub.f32 %v278, %v279
  %v281 = vand.u32 %v280, 4294901760
  %282 = vmatpush1.msra.mxu0 %v281
  %283 = vmatprep.subr.mxu0 0.0
  %284 = vmatpush1.msra.mxu0 0.0
  %285 = vmatprep.subr.mxu0 0.0
  %286 = vmatpush1.msra.mxu0 0.0
  %287 = vmatprep.subr.mxu0 0.0
  %288 = vmatpush1.msra.mxu0 0.0
  %289 = vmatprep.subr.mxu0 0.0
  %290 = vmatpush1.msra.mxu0 0.0
  %291 = vmatprep.subr.mxu0 0.0
  %292 = vmatpush1.msra.mxu0 0.0
  %293 = vmatprep.subr.mxu0 0.0
  %294 = vmatpush1.msra.mxu0 0.0
  %295 = vmatprep.subr.mxu0 0.0
  %296 = vmatpush1.msra.mxu0 0.0
  %297 = vmatprep.subr.mxu0 0.0
  %298 = vmatpush1.msra.mxu0 0.0
  %299 = vmatprep.subr.mxu0 0.0
  %300 = vmatpush1.msra.mxu0 0.0
  %301 = vmatprep.subr.mxu0 0.0
  %302 = vmatpush1.msra.mxu0 0.0
  %303 = vmatprep.subr.mxu0 0.0
  %304 = vmatpush1.msra.mxu0 0.0
  %305 = vmatprep.subr.mxu0 0.0
  %306 = vmatpush1.msra.mxu0 0.0
  %307 = vmatprep.subr.mxu0 0.0
  %308 = vmatpush1.msra.mxu0 0.0
  %309 = vmatprep.subr.mxu0 0.0
  %310 = vmatpush1.msra.mxu0 0.0
  %311 = vmatprep.subr.mxu0 0.0
  %312 = vmatpush1.msra.mxu0 0.0
  %313 = vmatprep.subr.mxu0 0.0
  %314 = vmatpush1.msra.mxu0 0.0
  %315 = vmatprep.subr.mxu0 0.0
  %316 = vmatpush1.msra.mxu0 0.0
  %317 = vmatprep.subr.mxu0 0.0
  %318 = vmatpush1.msra.mxu0 0.0
  %319 = vmatprep.subr.mxu0 0.0
  %320 = vmatpush1.msra.mxu0 0.0
  %321 = vmatprep.subr.mxu0 0.0
  %322 = vmatpush1.msra.mxu0 0.0
  %323 = vmatprep.subr.mxu0 0.0
  %324 = vmatpush1.msra.mxu0 0.0
  %325 = vmatprep.subr.mxu0 0.0
  %326 = vmatpush1.msra.mxu0 0.0
  %327 = vmatprep.subr.mxu0 0.0
  %328 = vmatpush1.msra.mxu0 0.0
  %329 = vmatprep.subr.mxu0 0.0
  %330 = vmatpush1.msra.mxu0 0.0
  %331 = vmatprep.mubr.f32.mxu0 0.0
  %v332 = vand.u32 %v83, 4294901760
  %333 = vmatmul.mubr.f32.gmra.mrb[0].mxu0 %v332
  %v334 = vpop.f32.mrb[0].mxu0
  %v335 = vadd.f32 %v166, %v334
  %v336 = vpop.f32.mrb[0].mxu0
  %v337 = vadd.f32 %v168, %v336
  %338 = vmatprep.mubr.f32.mxu0 0.0
  %v339 = vand.u32 %v86, 4294901760
  %340 = vmatmul.mubr.f32.gmra.mrb[0].mxu0 %v339
  %v341 = vpop.f32.mrb[0].mxu0
  %v342 = vadd.f32 %v177, %v341
  %v343 = vpop.f32.mrb[0].mxu0
  %v344 = vadd.f32 %v179, %v343
  %345 = vmatprep.mubr.f32.mxu0 0.0
  %v346 = vand.u32 %v89, 4294901760
  %347 = vmatmul.mubr.f32.gmra.mrb[0].mxu0 %v346
  %v348 = vpop.f32.mrb[0].mxu0
  %v349 = vadd.f32 %v188, %v348
  %v350 = vpop.f32.mrb[0].mxu0
  %v351 = vadd.f32 %v190, %v350
  %352 = vmatprep.mubr.f32.mxu0 0.0
  %v353 = vand.u32 %v92, 4294901760
  %354 = vmatmul.mubr.f32.gmra.mrb[0].mxu0 %v353
  %v355 = vpop.f32.mrb[0].mxu0
  %v356 = vadd.f32 %v199, %v355
  %v357 = vpop.f32.mrb[0].mxu0
  %v358 = vadd.f32 %v201, %v357
  %359 = vdwg.mxu0
  %v360 = vsub.f32 %v62, %v62
  %361 = vmatprep.subr.mxu0 %v360
  %v362 = vsub.f32 %v61, %v61
  %363 = vmatpush1.msra.mxu0 %v362
  %v364 = vsub.f32 %v64, %v64
  %365 = vmatprep.subr.mxu0 %v364
  %v366 = vsub.f32 %v63, %v63
  %367 = vmatpush1.msra.mxu0 %v366
  %v368 = vsub.f32 %v66, %v66
  %369 = vmatprep.subr.mxu0 %v368
  %v370 = vsub.f32 %v65, %v65
  %371 = vmatpush1.msra.mxu0 %v370
  %v372 = vsub.f32 %v68, %v68
  %373 = vmatprep.subr.mxu0 %v372
  %v374 = vsub.f32 %v67, %v67
  %375 = vmatpush1.msra.mxu0 %v374
  %v376 = vsub.f32 %v70, %v70
  %377 = vmatprep.subr.mxu0 %v376
  %v378 = vsub.f32 %v69, %v69
  %379 = vmatpush1.msra.mxu0 %v378
  %v380 = vsub.f32 %v72, %v72
  %381 = vmatprep.subr.mxu0 %v380
  %v382 = vsub.f32 %v71, %v71
  %383 = vmatpush1.msra.mxu0 %v382
  %v384 = vsub.f32 %v74, %v74
  %385 = vmatprep.subr.mxu0 %v384
  %v386 = vsub.f32 %v73, %v73
  %387 = vmatpush1.msra.mxu0 %v386
  %v388 = vsub.f32 %v76, %v76
  %389 = vmatprep.subr.mxu0 %v388
  %v390 = vsub.f32 %v75, %v75
  %391 = vmatpush1.msra.mxu0 %v390
  %392 = vmatprep.subr.mxu0 0.0
  %393 = vmatpush1.msra.mxu0 0.0
  %394 = vmatprep.subr.mxu0 0.0
  %395 = vmatpush1.msra.mxu0 0.0
  %396 = vmatprep.subr.mxu0 0.0
  %397 = vmatpush1.msra.mxu0 0.0
  %398 = vmatprep.subr.mxu0 0.0
  %399 = vmatpush1.msra.mxu0 0.0
  %400 = vmatprep.subr.mxu0 0.0
  %401 = vmatpush1.msra.mxu0 0.0
  %402 = vmatprep.subr.mxu0 0.0
  %403 = vmatpush1.msra.mxu0 0.0
  %404 = vmatprep.subr.mxu0 0.0
  %405 = vmatpush1.msra.mxu0 0.0
  %406 = vmatprep.subr.mxu0 0.0
  %407 = vmatpush1.msra.mxu0 0.0
  %408 = vmatprep.subr.mxu0 0.0
  %409 = vmatpush1.msra.mxu0 0.0
  %410 = vmatprep.subr.mxu0 0.0
  %411 = vmatpush1.msra.mxu0 0.0
  %412 = vmatprep.subr.mxu0 0.0
  %413 = vmatpush1.msra.mxu0 0.0
  %414 = vmatprep.subr.mxu0 0.0
  %415 = vmatpush1.msra.mxu0 0.0
  %416 = vmatprep.subr.mxu0 0.0
  %417 = vmatpush1.msra.mxu0 0.0
  %418 = vmatprep.subr.mxu0 0.0
  %419 = vmatpush1.msra.mxu0 0.0
  %420 = vmatprep.subr.mxu0 0.0
  %421 = vmatpush1.msra.mxu0 0.0
  %422 = vmatprep.subr.mxu0 0.0
  %423 = vmatpush1.msra.mxu0 0.0
  %424 = vmatprep.subr.mxu0 0.0
  %425 = vmatpush1.msra.mxu0 0.0
  %426 = vmatprep.subr.mxu0 0.0
  %427 = vmatpush1.msra.mxu0 0.0
  %428 = vmatprep.subr.mxu0 0.0
  %429 = vmatpush1.msra.mxu0 0.0
  %430 = vmatprep.subr.mxu0 0.0
  %431 = vmatpush1.msra.mxu0 0.0
  %432 = vmatprep.subr.mxu0 0.0
  %433 = vmatpush1.msra.mxu0 0.0
  %434 = vmatprep.subr.mxu0 0.0
  %435 = vmatpush1.msra.mxu0 0.0
  %436 = vmatprep.subr.mxu0 0.0
  %437 = vmatpush1.msra.mxu0 0.0
  %438 = vmatprep.subr.mxu0 0.0
  %439 = vmatpush1.msra.mxu0 0.0
  %440 = vmatprep.mubr.f32.mxu0 0.0
  %v441 = vand.u32 %v83, 4294901760
  %v442 = vsub.f32 %v83, %v441
  %443 = vmatmul.mubr.f32.gmra.mrb[0].mxu0 %v442
  %v444 = vpop.f32.mrb[0].mxu0
  %v445 = vadd.f32 %v335, %v444
  %v446 = vpop.f32.mrb[0].mxu0
  %v447 = vadd.f32 %v337, %v446
  %448 = vmatprep.mubr.f32.mxu0 0.0
  %v449 = vand.u32 %v86, 4294901760
  %v450 = vsub.f32 %v86, %v449
  %451 = vmatmul.mubr.f32.gmra.mrb[0].mxu0 %v450
  %v452 = vpop.f32.mrb[0].mxu0
  %v453 = vadd.f32 %v342, %v452
  %v454 = vpop.f32.mrb[0].mxu0
  %v455 = vadd.f32 %v344, %v454
  %456 = vmatprep.mubr.f32.mxu0 0.0
  %v457 = vand.u32 %v89, 4294901760
  %v458 = vsub.f32 %v89, %v457
  %459 = vmatmul.mubr.f32.gmra.mrb[0].mxu0 %v458
  %v460 = vpop.f32.mrb[0].mxu0
  %v461 = vadd.f32 %v349, %v460
  %v462 = vpop.f32.mrb[0].mxu0
  %v463 = vadd.f32 %v351, %v462
  %464 = vmatprep.mubr.f32.mxu0 0.0
  %v465 = vand.u32 %v92, 4294901760
  %v466 = vsub.f32 %v92, %v465
  %467 = vmatmul.mubr.f32.gmra.mrb[0].mxu0 %v466
  %v468 = vpop.f32.mrb[0].mxu0
  %v469 = vadd.f32 %v356, %v468
  %v470 = vpop.f32.mrb[0].mxu0
  %v471 = vadd.f32 %v358, %v470
  %472 = vdwg.mxu0
  %473 = vmatprep.subr.mxu0 %v62
  %474 = vmatpush1.msra.mxu0 %v61
  %475 = vmatprep.subr.mxu0 %v64
  %476 = vmatpush1.msra.mxu0 %v63
  %477 = vmatprep.subr.mxu0 %v66
  %478 = vmatpush1.msra.mxu0 %v65
  %479 = vmatprep.subr.mxu0 %v68
  %480 = vmatpush1.msra.mxu0 %v67
  %481 = vmatprep.subr.mxu0 %v70
  %482 = vmatpush1.msra.mxu0 %v69
  %483 = vmatprep.subr.mxu0 %v72
  %484 = vmatpush1.msra.mxu0 %v71
  %485 = vmatprep.subr.mxu0 %v74
  %486 = vmatpush1.msra.mxu0 %v73
  %487 = vmatprep.subr.mxu0 %v76
  %488 = vmatpush1.msra.mxu0 %v75
  %489 = vmatprep.subr.mxu0 0.0
  %490 = vmatpush1.msra.mxu0 0.0
  %491 = vmatprep.subr.mxu0 0.0
  %492 = vmatpush1.msra.mxu0 0.0
  %493 = vmatprep.subr.mxu0 0.0
  %494 = vmatpush1.msra.mxu0 0.0
  %495 = vmatprep.subr.mxu0 0.0
  %496 = vmatpush1.msra.mxu0 0.0
  %497 = vmatprep.subr.mxu0 0.0
  %498 = vmatpush1.msra.mxu0 0.0
  %499 = vmatprep.subr.mxu0 0.0
  %500 = vmatpush1.msra.mxu0 0.0
  %501 = vmatprep.subr.mxu0 0.0
  %502 = vmatpush1.msra.mxu0 0.0
  %503 = vmatprep.subr.mxu0 0.0
  %504 = vmatpush1.msra.mxu0 0.0
  %505 = vmatprep.subr.mxu0 0.0
  %506 = vmatpush1.msra.mxu0 0.0
  %507 = vmatprep.subr.mxu0 0.0
  %508 = vmatpush1.msra.mxu0 0.0
  %509 = vmatprep.subr.mxu0 0.0
  %510 = vmatpush1.msra.mxu0 0.0
  %511 = vmatprep.subr.mxu0 0.0
  %512 = vmatpush1.msra.mxu0 0.0
  %513 = vmatprep.subr.mxu0 0.0
  %514 = vmatpush1.msra.mxu0 0.0
  %515 = vmatprep.subr.mxu0 0.0
  %516 = vmatpush1.msra.mxu0 0.0
  %517 = vmatprep.subr.mxu0 0.0
  %518 = vmatpush1.msra.mxu0 0.0
  %519 = vmatprep.subr.mxu0 0.0
  %520 = vmatpush1.msra.mxu0 0.0
  %521 = vmatprep.subr.mxu0 0.0
  %522 = vmatpush1.msra.mxu0 0.0
  %523 = vmatprep.subr.mxu0 0.0
  %524 = vmatpush1.msra.mxu0 0.0
  %525 = vmatprep.subr.mxu0 0.0
  %526 = vmatpush1.msra.mxu0 0.0
  %527 = vmatprep.subr.mxu0 0.0
  %528 = vmatpush1.msra.mxu0 0.0
  %529 = vmatprep.subr.mxu0 0.0
  %530 = vmatpush1.msra.mxu0 0.0
  %531 = vmatprep.subr.mxu0 0.0
  %532 = vmatpush1.msra.mxu0 0.0
  %533 = vmatprep.subr.mxu0 0.0
  %534 = vmatpush1.msra.mxu0 0.0
  %535 = vmatprep.subr.mxu0 0.0
  %536 = vmatpush1.msra.mxu0 0.0
  %537 = vmatprep.mubr.f32.mxu0 0.0
  %v538 = vand.u32 %v83, 4294901760
  %v539 = vsub.f32 %v83, %v538
  %v540 = vand.u32 %v539, 4294901760
  %541 = vmatmul.mubr.f32.gmra.mrb[0].mxu0 %v540
  %v542 = vpop.f32.mrb[0].mxu0
  %v543 = vadd.f32 %v445, %v542
  %v544 = vpop.f32.mrb[0].mxu0
  %v545 = vadd.f32 %v447, %v544
  %546 = vmatprep.mubr.f32.mxu0 0.0
  %v547 = vand.u32 %v86, 4294901760
  %v548 = vsub.f32 %v86, %v547
  %v549 = vand.u32 %v548, 4294901760
  %550 = vmatmul.mubr.f32.gmra.mrb[0].mxu0 %v549
  %v551 = vpop.f32.mrb[0].mxu0
  %v552 = vadd.f32 %v453, %v551
  %v553 = vpop.f32.mrb[0].mxu0
  %v554 = vadd.f32 %v455, %v553
  %555 = vmatprep.mubr.f32.mxu0 0.0
  %v556 = vand.u32 %v89, 4294901760
  %v557 = vsub.f32 %v89, %v556
  %v558 = vand.u32 %v557, 4294901760
  %559 = vmatmul.mubr.f32.gmra.mrb[0].mxu0 %v558
  %v560 = vpop.f32.mrb[0].mxu0
  %v561 = vadd.f32 %v461, %v560
  %v562 = vpop.f32.mrb[0].mxu0
  %v563 = vadd.f32 %v463, %v562
  %564 = vmatprep.mubr.f32.mxu0 0.0
  %v565 = vand.u32 %v92, 4294901760
  %v566 = vsub.f32 %v92, %v565
  %v567 = vand.u32 %v566, 4294901760
  %568 = vmatmul.mubr.f32.gmra.mrb[0].mxu0 %v567
  %v569 = vpop.f32.mrb[0].mxu0
  %v570 = vadd.f32 %v469, %v569
  %v571 = vpop.f32.mrb[0].mxu0
  %v572 = vadd.f32 %v471, %v571
  %573 = vdwg.mxu0
  %v574 = vsub.f32 %v62, %v62
  %v575 = vand.u32 %v574, 4294901760
  %576 = vmatprep.subr.mxu0 %v575
  %v577 = vsub.f32 %v61, %v61
  %v578 = vand.u32 %v577, 4294901760
  %579 = vmatpush1.msra.mxu0 %v578
  %v580 = vsub.f32 %v64, %v64
  %v581 = vand.u32 %v580, 4294901760
  %582 = vmatprep.subr.mxu0 %v581
  %v583 = vsub.f32 %v63, %v63
  %v584 = vand.u32 %v583, 4294901760
  %585 = vmatpush1.msra.mxu0 %v584
  %v586 = vsub.f32 %v66, %v66
  %v587 = vand.u32 %v586, 4294901760
  %588 = vmatprep.subr.mxu0 %v587
  %v589 = vsub.f32 %v65, %v65
  %v590 = vand.u32 %v589, 4294901760
  %591 = vmatpush1.msra.mxu0 %v590
  %v592 = vsub.f32 %v68, %v68
  %v593 = vand.u32 %v592, 4294901760
  %594 = vmatprep.subr.mxu0 %v593
  %v595 = vsub.f32 %v67, %v67
  %v596 = vand.u32 %v595, 4294901760
  %597 = vmatpush1.msra.mxu0 %v596
  %v598 = vsub.f32 %v70, %v70
  %v599 = vand.u32 %v598, 4294901760
  %600 = vmatprep.subr.mxu0 %v599
  %v601 = vsub.f32 %v69, %v69
  %v602 = vand.u32 %v601, 4294901760
  %603 = vmatpush1.msra.mxu0 %v602
  %v604 = vsub.f32 %v72, %v72
  %v605 = vand.u32 %v604, 4294901760
  %606 = vmatprep.subr.mxu0 %v605
  %v607 = vsub.f32 %v71, %v71
  %v608 = vand.u32 %v607, 4294901760
  %609 = vmatpush1.msra.mxu0 %v608
  %v610 = vsub.f32 %v74, %v74
  %v611 = vand.u32 %v610, 4294901760
  %612 = vmatprep.subr.mxu0 %v611
  %v613 = vsub.f32 %v73, %v73
  %v614 = vand.u32 %v613, 4294901760
  %615 = vmatpush1.msra.mxu0 %v614
  %v616 = vsub.f32 %v76, %v76
  %v617 = vand.u32 %v616, 4294901760
  %618 = vmatprep.subr.mxu0 %v617
  %v619 = vsub.f32 %v75, %v75
  %v620 = vand.u32 %v619, 4294901760
  %621 = vmatpush1.msra.mxu0 %v620
  %622 = vmatprep.subr.mxu0 0.0
  %623 = vmatpush1.msra.mxu0 0.0
  %624 = vmatprep.subr.mxu0 0.0
  %625 = vmatpush1.msra.mxu0 0.0
  %626 = vmatprep.subr.mxu0 0.0
  %627 = vmatpush1.msra.mxu0 0.0
  %628 = vmatprep.subr.mxu0 0.0
  %629 = vmatpush1.msra.mxu0 0.0
  %630 = vmatprep.subr.mxu0 0.0
  %631 = vmatpush1.msra.mxu0 0.0
  %632 = vmatprep.subr.mxu0 0.0
  %633 = vmatpush1.msra.mxu0 0.0
  %634 = vmatprep.subr.mxu0 0.0
  %635 = vmatpush1.msra.mxu0 0.0
  %636 = vmatprep.subr.mxu0 0.0
  %637 = vmatpush1.msra.mxu0 0.0
  %638 = vmatprep.subr.mxu0 0.0
  %639 = vmatpush1.msra.mxu0 0.0
  %640 = vmatprep.subr.mxu0 0.0
  %641 = vmatpush1.msra.mxu0 0.0
  %642 = vmatprep.subr.mxu0 0.0
  %643 = vmatpush1.msra.mxu0 0.0
  %644 = vmatprep.subr.mxu0 0.0
  %645 = vmatpush1.msra.mxu0 0.0
  %646 = vmatprep.subr.mxu0 0.0
  %647 = vmatpush1.msra.mxu0 0.0
  %648 = vmatprep.subr.mxu0 0.0
  %649 = vmatpush1.msra.mxu0 0.0
  %650 = vmatprep.subr.mxu0 0.0
  %651 = vmatpush1.msra.mxu0 0.0
  %652 = vmatprep.subr.mxu0 0.0
  %653 = vmatpush1.msra.mxu0 0.0
  %654 = vmatprep.subr.mxu0 0.0
  %655 = vmatpush1.msra.mxu0 0.0
  %656 = vmatprep.subr.mxu0 0.0
  %657 = vmatpush1.msra.mxu0 0.0
  %658 = vmatprep.subr.mxu0 0.0
  %659 = vmatpush1.msra.mxu0 0.0
  %660 = vmatprep.subr.mxu0 0.0
  %661 = vmatpush1.msra.mxu0 0.0
  %662 = vmatprep.subr.mxu0 0.0
  %663 = vmatpush1.msra.mxu0 0.0
  %664 = vmatprep.subr.mxu0 0.0
  %665 = vmatpush1.msra.mxu0 0.0
  %666 = vmatprep.subr.mxu0 0.0
  %667 = vmatpush1.msra.mxu0 0.0
  %668 = vmatprep.subr.mxu0 0.0
  %669 = vmatpush1.msra.mxu0 0.0
  %670 = vmatprep.mubr.f32.mxu0 0.0
  %v671 = vand.u32 %v83, 4294901760
  %672 = vmatmul.mubr.f32.gmra.mrb[0].mxu0 %v671
  %v673 = vpop.f32.mrb[0].mxu0
  %v674 = vadd.f32 %v543, %v673
  %v675 = vpop.f32.mrb[0].mxu0
  %v676 = vadd.f32 %v545, %v675
  %677 = vmatprep.mubr.f32.mxu0 0.0
  %v678 = vand.u32 %v86, 4294901760
  %679 = vmatmul.mubr.f32.gmra.mrb[0].mxu0 %v678
  %v680 = vpop.f32.mrb[0].mxu0
  %v681 = vadd.f32 %v552, %v680
  %v682 = vpop.f32.mrb[0].mxu0
  %v683 = vadd.f32 %v554, %v682
  %684 = vmatprep.mubr.f32.mxu0 0.0
  %v685 = vand.u32 %v89, 4294901760
  %686 = vmatmul.mubr.f32.gmra.mrb[0].mxu0 %v685
  %v687 = vpop.f32.mrb[0].mxu0
  %v688 = vadd.f32 %v561, %v687
  %v689 = vpop.f32.mrb[0].mxu0
  %v690 = vadd.f32 %v563, %v689
  %691 = vmatprep.mubr.f32.mxu0 0.0
  %v692 = vand.u32 %v92, 4294901760
  %693 = vmatmul.mubr.f32.gmra.mrb[0].mxu0 %v692
  %v694 = vpop.f32.mrb[0].mxu0
  %v695 = vadd.f32 %v570, %v694
  %v696 = vpop.f32.mrb[0].mxu0
  %v697 = vadd.f32 %v572, %v696
  %698 = vdwg.mxu0
  %699 = vmatprep.subr.mxu0 %v62
  %700 = vmatpush1.msra.mxu0 %v61
  %701 = vmatprep.subr.mxu0 %v64
  %702 = vmatpush1.msra.mxu0 %v63
  %703 = vmatprep.subr.mxu0 %v66
  %704 = vmatpush1.msra.mxu0 %v65
  %705 = vmatprep.subr.mxu0 %v68
  %706 = vmatpush1.msra.mxu0 %v67
  %707 = vmatprep.subr.mxu0 %v70
  %708 = vmatpush1.msra.mxu0 %v69
  %709 = vmatprep.subr.mxu0 %v72
  %710 = vmatpush1.msra.mxu0 %v71
  %711 = vmatprep.subr.mxu0 %v74
  %712 = vmatpush1.msra.mxu0 %v73
  %713 = vmatprep.subr.mxu0 %v76
  %714 = vmatpush1.msra.mxu0 %v75
  %715 = vmatprep.subr.mxu0 0.0
  %716 = vmatpush1.msra.mxu0 0.0
  %717 = vmatprep.subr.mxu0 0.0
  %718 = vmatpush1.msra.mxu0 0.0
  %719 = vmatprep.subr.mxu0 0.0
  %720 = vmatpush1.msra.mxu0 0.0
  %721 = vmatprep.subr.mxu0 0.0
  %722 = vmatpush1.msra.mxu0 0.0
  %723 = vmatprep.subr.mxu0 0.0
  %724 = vmatpush1.msra.mxu0 0.0
  %725 = vmatprep.subr.mxu0 0.0
  %726 = vmatpush1.msra.mxu0 0.0
  %727 = vmatprep.subr.mxu0 0.0
  %728 = vmatpush1.msra.mxu0 0.0
  %729 = vmatprep.subr.mxu0 0.0
  %730 = vmatpush1.msra.mxu0 0.0
  %731 = vmatprep.subr.mxu0 0.0
  %732 = vmatpush1.msra.mxu0 0.0
  %733 = vmatprep.subr.mxu0 0.0
  %734 = vmatpush1.msra.mxu0 0.0
  %735 = vmatprep.subr.mxu0 0.0
  %736 = vmatpush1.msra.mxu0 0.0
  %737 = vmatprep.subr.mxu0 0.0
  %738 = vmatpush1.msra.mxu0 0.0
  %739 = vmatprep.subr.mxu0 0.0
  %740 = vmatpush1.msra.mxu0 0.0
  %741 = vmatprep.subr.mxu0 0.0
  %742 = vmatpush1.msra.mxu0 0.0
  %743 = vmatprep.subr.mxu0 0.0
  %744 = vmatpush1.msra.mxu0 0.0
  %745 = vmatprep.subr.mxu0 0.0
  %746 = vmatpush1.msra.mxu0 0.0
  %747 = vmatprep.subr.mxu0 0.0
  %748 = vmatpush1.msra.mxu0 0.0
  %749 = vmatprep.subr.mxu0 0.0
  %750 = vmatpush1.msra.mxu0 0.0
  %751 = vmatprep.subr.mxu0 0.0
  %752 = vmatpush1.msra.mxu0 0.0
  %753 = vmatprep.subr.mxu0 0.0
  %754 = vmatpush1.msra.mxu0 0.0
  %755 = vmatprep.subr.mxu0 0.0
  %756 = vmatpush1.msra.mxu0 0.0
  %757 = vmatprep.subr.mxu0 0.0
  %758 = vmatpush1.msra.mxu0 0.0
  %759 = vmatprep.subr.mxu0 0.0
  %760 = vmatpush1.msra.mxu0 0.0
  %761 = vmatprep.subr.mxu0 0.0
  %762 = vmatpush1.msra.mxu0 0.0
  %763 = vmatprep.mubr.f32.mxu0 0.0
  %v764 = vand.u32 %v83, 4294901760
  %765 = vmatmul.mubr.f32.gmra.mrb[0].mxu0 %v764
  %v766 = vpop.f32.mrb[0].mxu0
  %v767 = vadd.f32 %v674, %v766
  %v768 = vpop.f32.mrb[0].mxu0
  %v769 = vadd.f32 %v676, %v768
  %770 = vmatprep.mubr.f32.mxu0 0.0
  %v771 = vand.u32 %v86, 4294901760
  %772 = vmatmul.mubr.f32.gmra.mrb[0].mxu0 %v771
  %v773 = vpop.f32.mrb[0].mxu0
  %v774 = vadd.f32 %v681, %v773
  %v775 = vpop.f32.mrb[0].mxu0
  %v776 = vadd.f32 %v683, %v775
  %777 = vmatprep.mubr.f32.mxu0 0.0
  %v778 = vand.u32 %v89, 4294901760
  %779 = vmatmul.mubr.f32.gmra.mrb[0].mxu0 %v778
  %v780 = vpop.f32.mrb[0].mxu0
  %v781 = vadd.f32 %v688, %v780
  %v782 = vpop.f32.mrb[0].mxu0
  %v783 = vadd.f32 %v690, %v782
  %784 = vmatprep.mubr.f32.mxu0 0.0
  %v785 = vand.u32 %v92, 4294901760
  %786 = vmatmul.mubr.f32.gmra.mrb[0].mxu0 %v785
  %v787 = vpop.f32.mrb[0].mxu0
  %v788 = vadd.f32 %v695, %v787
  %v789 = vpop.f32.mrb[0].mxu0
  %v790 = vadd.f32 %v697, %v789
  %791 = vdwg.mxu0
  %v792 = vld [vmem:[%s0 + $0x20] sm:$0xff]
  %v793 = vld [vmem:[%s0 + $0x28] sm:$0xff]
  %v794 = vld [vmem:[%s0 + $0x30] sm:$0xff]
  %v795 = vld [vmem:[%s0 + $0x38] sm:$0xff]
  %v796 = vld [vmem:[%s0 + $0x60] sm:$0xff]
  %v797 = vld [vmem:[%s0 + $0x68] sm:$0xff]
  %v798 = vld [vmem:[%s0 + $0x70] sm:$0xff]
  %v799 = vld [vmem:[%s0 + $0x78] sm:$0xff]
  %v800 = vmul.f32 %v792, %v767
  %v801 = vmul.f32 %v793, %v769
  %v802 = vmul.f32 %v794, %v774
  %v803 = vmul.f32 %v795, %v776
  %v804 = vmul.f32 %v796, %v781
  %v805 = vmul.f32 %v797, %v783
  %v806 = vmul.f32 %v798, %v788
  %v807 = vmul.f32 %v799, %v790
  %vm808 = vcmp.ge.s32.totalorder %v18, 16
  %vm809 = vcmp.ge.s32.totalorder %v19, 16
  %810 = vrot.lane.b32.xlu0 %v800, 16
  %v811 = vpop.permute.xlu0 %810
  %812 = vrot.lane.b32.xlu0 %v802, 16
  %v813 = vpop.permute.xlu0 %812
  %814 = vrot.lane.b32.xlu0 %v804, 16
  %v815 = vpop.permute.xlu0 %814
  %816 = vrot.lane.b32.xlu0 %v806, 16
  %v817 = vpop.permute.xlu0 %816
  %818 = vrot.lane.b32.xlu0 %v801, 16
  %v819 = vpop.permute.xlu0 %818
  %820 = vrot.lane.b32.xlu0 %v803, 16
  %v821 = vpop.permute.xlu0 %820
  %822 = vrot.lane.b32.xlu0 %v805, 16
  %v823 = vpop.permute.xlu0 %822
  %824 = vrot.lane.b32.xlu0 %v807, 16
  %v825 = vpop.permute.xlu0 %824
  %vm826 = vcmp.lt.s32.totalorder %v18, 16
  %v827 = vsel %vm826, %v811, %v819
  %v828 = vsel %vm826, %v813, %v821
  %v829 = vsel %vm826, %v815, %v823
  %v830 = vsel %vm826, %v817, %v825
  %v831 = vsel %vm826, %v819, %v811
  %v832 = vsel %vm826, %v821, %v813
  %v833 = vsel %vm826, %v823, %v815
  %v834 = vsel %vm826, %v825, %v817
  %v835 = vsel %vm808, 1, 0
  %v836 = vsel %vm809, 1, 0
  %vm837 = vcmp.eq.s32.totalorder %v835, 1
  %vm838 = vcmp.eq.s32.totalorder %v836, 1
  %v839 = vsel %vm837, %v831, 0.0
  %v840 = vsel %vm838, %v827, 0.0
  %v841 = vsel %vm837, %v832, 0.0
  %v842 = vsel %vm838, %v828, 0.0
  %v843 = vsel %vm837, %v833, 0.0
  %v844 = vsel %vm838, %v829, 0.0
  %v845 = vsel %vm837, %v834, 0.0
  %v846 = vsel %vm838, %v830, 0.0
  %vm847 = vcmp.lt.s32.totalorder %v18, 240
  %vm848 = vcmp.lt.s32.totalorder %v19, 240
  %849 = vrot.lane.b32.xlu0 %v800, 112
  %v850 = vpop.permute.xlu0 %849
  %851 = vrot.lane.b32.xlu0 %v802, 112
  %v852 = vpop.permute.xlu0 %851
  %853 = vrot.lane.b32.xlu0 %v804, 112
  %v854 = vpop.permute.xlu0 %853
  %855 = vrot.lane.b32.xlu0 %v806, 112
  %v856 = vpop.permute.xlu0 %855
  %857 = vrot.lane.b32.xlu0 %v801, 112
  %v858 = vpop.permute.xlu0 %857
  %859 = vrot.lane.b32.xlu0 %v803, 112
  %v860 = vpop.permute.xlu0 %859
  %861 = vrot.lane.b32.xlu0 %v805, 112
  %v862 = vpop.permute.xlu0 %861
  %863 = vrot.lane.b32.xlu0 %v807, 112
  %v864 = vpop.permute.xlu0 %863
  %vm865 = vcmp.lt.s32.totalorder %v18, 112
  %v866 = vsel %vm865, %v850, %v858
  %v867 = vsel %vm865, %v852, %v860
  %v868 = vsel %vm865, %v854, %v862
  %v869 = vsel %vm865, %v856, %v864
  %v870 = vsel %vm865, %v858, %v850
  %v871 = vsel %vm865, %v860, %v852
  %v872 = vsel %vm865, %v862, %v854
  %v873 = vsel %vm865, %v864, %v856
  %v874 = vsel %vm847, 1, 0
  %v875 = vsel %vm848, 1, 0
  %vm876 = vcmp.eq.s32.totalorder %v874, 1
  %vm877 = vcmp.eq.s32.totalorder %v875, 1
  %v878 = vsel %vm876, %v866, 0.0
  %v879 = vsel %vm877, %v870, 0.0
  %v880 = vsel %vm876, %v867, 0.0
  %v881 = vsel %vm877, %v871, 0.0
  %v882 = vsel %vm876, %v868, 0.0
  %v883 = vsel %vm877, %v872, 0.0
  %v884 = vsel %vm876, %v869, 0.0
  %v885 = vsel %vm877, %v873, 0.0
  %887 = vset.pattern.permute.xlu0 0
  %888 = vperm.xlu0 %887, %v14
  %v889 = vpop.permute.xlu0 %888
  %892 = vset.pattern.permute.xlu0 0
  %893 = vperm.xlu0 %892, %v15
  %v894 = vpop.permute.xlu0 %893
  %v896 = vmul.f32 %v839, %v889
  %v897 = vmul.f32 %v840, %v889
  %v898 = vmul.f32 %v841, %v894
  %v899 = vmul.f32 %v842, %v894
  %v900 = vmul.f32 %v843, %v889
  %v901 = vmul.f32 %v844, %v889
  %v902 = vmul.f32 %v845, %v894
  %v903 = vmul.f32 %v846, %v894
  %904 = vset.pattern.permute.xlu0 3
  %905 = vperm.xlu0 %904, %v14
  %v906 = vpop.permute.xlu0 %905
  %908 = vset.pattern.permute.xlu0 3
  %909 = vperm.xlu0 %908, %v15
  %v910 = vpop.permute.xlu0 %909
  %v912 = vmul.f32 %v800, %v906
  %v913 = vmul.f32 %v801, %v906
  %v914 = vmul.f32 %v802, %v910
  %v915 = vmul.f32 %v803, %v910
  %v916 = vmul.f32 %v804, %v906
  %v917 = vmul.f32 %v805, %v906
  %v918 = vmul.f32 %v806, %v910
  %v919 = vmul.f32 %v807, %v910
  %v920 = vadd.f32 %v896, %v912
  %v921 = vadd.f32 %v897, %v913
  %v922 = vadd.f32 %v898, %v914
  %v923 = vadd.f32 %v899, %v915
  %v924 = vadd.f32 %v900, %v916
  %v925 = vadd.f32 %v901, %v917
  %v926 = vadd.f32 %v902, %v918
  %v927 = vadd.f32 %v903, %v919
  %928 = vset.pattern.permute.xlu0 6
  %929 = vperm.xlu0 %928, %v14
  %v930 = vpop.permute.xlu0 %929
  %932 = vset.pattern.permute.xlu0 6
  %933 = vperm.xlu0 %932, %v15
  %v934 = vpop.permute.xlu0 %933
  %v936 = vmul.f32 %v878, %v930
  %v937 = vmul.f32 %v879, %v930
  %v938 = vmul.f32 %v880, %v934
  %v939 = vmul.f32 %v881, %v934
  %v940 = vmul.f32 %v882, %v930
  %v941 = vmul.f32 %v883, %v930
  %v942 = vmul.f32 %v884, %v934
  %v943 = vmul.f32 %v885, %v934
  %v944 = vadd.f32 %v920, %v936
  %v945 = vadd.f32 %v921, %v937
  %v946 = vadd.f32 %v922, %v938
  %v947 = vadd.f32 %v923, %v939
  %v948 = vadd.f32 %v924, %v940
  %v949 = vadd.f32 %v925, %v941
  %v950 = vadd.f32 %v926, %v942
  %v951 = vadd.f32 %v927, %v943
  %952 = vset.pattern.permute.xlu0 1
  %953 = vperm.xlu0 %952, %v14
  %v954 = vpop.permute.xlu0 %953
  %956 = vset.pattern.permute.xlu0 1
  %957 = vperm.xlu0 %956, %v15
  %v958 = vpop.permute.xlu0 %957
  %v960 = vmul.f32 %v839, %v954
  %v961 = vmul.f32 %v840, %v954
  %v962 = vmul.f32 %v841, %v958
  %v963 = vmul.f32 %v842, %v958
  %v964 = vmul.f32 %v843, %v954
  %v965 = vmul.f32 %v844, %v954
  %v966 = vmul.f32 %v845, %v958
  %v967 = vmul.f32 %v846, %v958
  %968 = vset.pattern.permute.xlu0 4
  %969 = vperm.xlu0 %968, %v14
  %v970 = vpop.permute.xlu0 %969
  %972 = vset.pattern.permute.xlu0 4
  %973 = vperm.xlu0 %972, %v15
  %v974 = vpop.permute.xlu0 %973
  %v976 = vmul.f32 %v800, %v970
  %v977 = vmul.f32 %v801, %v970
  %v978 = vmul.f32 %v802, %v974
  %v979 = vmul.f32 %v803, %v974
  %v980 = vmul.f32 %v804, %v970
  %v981 = vmul.f32 %v805, %v970
  %v982 = vmul.f32 %v806, %v974
  %v983 = vmul.f32 %v807, %v974
  %v984 = vadd.f32 %v960, %v976
  %v985 = vadd.f32 %v961, %v977
  %v986 = vadd.f32 %v962, %v978
  %v987 = vadd.f32 %v963, %v979
  %v988 = vadd.f32 %v964, %v980
  %v989 = vadd.f32 %v965, %v981
  %v990 = vadd.f32 %v966, %v982
  %v991 = vadd.f32 %v967, %v983
  %992 = vset.pattern.permute.xlu0 7
  %993 = vperm.xlu0 %992, %v14
  %v994 = vpop.permute.xlu0 %993
  %996 = vset.pattern.permute.xlu0 7
  %997 = vperm.xlu0 %996, %v15
  %v998 = vpop.permute.xlu0 %997
  %v1000 = vmul.f32 %v878, %v994
  %v1001 = vmul.f32 %v879, %v994
  %v1002 = vmul.f32 %v880, %v998
  %v1003 = vmul.f32 %v881, %v998
  %v1004 = vmul.f32 %v882, %v994
  %v1005 = vmul.f32 %v883, %v994
  %v1006 = vmul.f32 %v884, %v998
  %v1007 = vmul.f32 %v885, %v998
  %v1008 = vadd.f32 %v984, %v1000
  %v1009 = vadd.f32 %v985, %v1001
  %v1010 = vadd.f32 %v986, %v1002
  %v1011 = vadd.f32 %v987, %v1003
  %v1012 = vadd.f32 %v988, %v1004
  %v1013 = vadd.f32 %v989, %v1005
  %v1014 = vadd.f32 %v990, %v1006
  %v1015 = vadd.f32 %v991, %v1007
  %1016 = vset.pattern.permute.xlu0 2
  %1017 = vperm.xlu0 %1016, %v14
  %v1018 = vpop.permute.xlu0 %1017
  %1020 = vset.pattern.permute.xlu0 2
  %1021 = vperm.xlu0 %1020, %v15
  %v1022 = vpop.permute.xlu0 %1021
  %v1024 = vmul.f32 %v839, %v1018
  %v1025 = vmul.f32 %v840, %v1018
  %v1026 = vmul.f32 %v841, %v1022
  %v1027 = vmul.f32 %v842, %v1022
  %v1028 = vmul.f32 %v843, %v1018
  %v1029 = vmul.f32 %v844, %v1018
  %v1030 = vmul.f32 %v845, %v1022
  %v1031 = vmul.f32 %v846, %v1022
  %1032 = vset.pattern.permute.xlu0 5
  %1033 = vperm.xlu0 %1032, %v14
  %v1034 = vpop.permute.xlu0 %1033
  %1036 = vset.pattern.permute.xlu0 5
  %1037 = vperm.xlu0 %1036, %v15
  %v1038 = vpop.permute.xlu0 %1037
  %v1040 = vmul.f32 %v800, %v1034
  %v1041 = vmul.f32 %v801, %v1034
  %v1042 = vmul.f32 %v802, %v1038
  %v1043 = vmul.f32 %v803, %v1038
  %v1044 = vmul.f32 %v804, %v1034
  %v1045 = vmul.f32 %v805, %v1034
  %v1046 = vmul.f32 %v806, %v1038
  %v1047 = vmul.f32 %v807, %v1038
  %v1048 = vadd.f32 %v1024, %v1040
  %v1049 = vadd.f32 %v1025, %v1041
  %v1050 = vadd.f32 %v1026, %v1042
  %v1051 = vadd.f32 %v1027, %v1043
  %v1052 = vadd.f32 %v1028, %v1044
  %v1053 = vadd.f32 %v1029, %v1045
  %v1054 = vadd.f32 %v1030, %v1046
  %v1055 = vadd.f32 %v1031, %v1047
  %1056 = vset.pattern.permute.xlu0 8
  %1057 = vperm.xlu0 %1056, %v14
  %v1058 = vpop.permute.xlu0 %1057
  %1060 = vset.pattern.permute.xlu0 8
  %1061 = vperm.xlu0 %1060, %v15
  %v1062 = vpop.permute.xlu0 %1061
  %v1064 = vmul.f32 %v878, %v1058
  %v1065 = vmul.f32 %v879, %v1058
  %v1066 = vmul.f32 %v880, %v1062
  %v1067 = vmul.f32 %v881, %v1062
  %v1068 = vmul.f32 %v882, %v1058
  %v1069 = vmul.f32 %v883, %v1058
  %v1070 = vmul.f32 %v884, %v1062
  %v1071 = vmul.f32 %v885, %v1062
  %v1072 = vadd.f32 %v1048, %v1064
  %v1073 = vadd.f32 %v1049, %v1065
  %v1074 = vadd.f32 %v1050, %v1066
  %v1075 = vadd.f32 %v1051, %v1067
  %v1076 = vadd.f32 %v1052, %v1068
  %v1077 = vadd.f32 %v1053, %v1069
  %v1078 = vadd.f32 %v1054, %v1070
  %v1079 = vadd.f32 %v1055, %v1071
  %vm1080 = vcmp.ge.s32.totalorder %v22, 1
  %vm1081 = vcmp.ge.s32.totalorder %v23, 1
  %1082 = vrot.lane.b32.xlu0 %v944, 1
  %v1083 = vpop.permute.xlu0 %1082
  %1084 = vrot.lane.b32.xlu0 %v946, 1
  %v1085 = vpop.permute.xlu0 %1084
  %1086 = vrot.lane.b32.xlu0 %v948, 1
  %v1087 = vpop.permute.xlu0 %1086
  %1088 = vrot.lane.b32.xlu0 %v950, 1
  %v1089 = vpop.permute.xlu0 %1088
  %1090 = vrot.lane.b32.xlu0 %v945, 1
  %v1091 = vpop.permute.xlu0 %1090
  %1092 = vrot.lane.b32.xlu0 %v947, 1
  %v1093 = vpop.permute.xlu0 %1092
  %1094 = vrot.lane.b32.xlu0 %v949, 1
  %v1095 = vpop.permute.xlu0 %1094
  %1096 = vrot.lane.b32.xlu0 %v951, 1
  %v1097 = vpop.permute.xlu0 %1096
  %vm1098 = vcmp.lt.s32.totalorder %v18, 1
  %v1099 = vsel %vm1098, %v1083, %v1091
  %v1100 = vsel %vm1098, %v1085, %v1093
  %v1101 = vsel %vm1098, %v1087, %v1095
  %v1102 = vsel %vm1098, %v1089, %v1097
  %v1103 = vsel %vm1098, %v1091, %v1083
  %v1104 = vsel %vm1098, %v1093, %v1085
  %v1105 = vsel %vm1098, %v1095, %v1087
  %v1106 = vsel %vm1098, %v1097, %v1089
  %v1107 = vsel %vm1080, 1, 0
  %v1108 = vsel %vm1081, 1, 0
  %vm1109 = vcmp.eq.s32.totalorder %v1107, 1
  %vm1110 = vcmp.eq.s32.totalorder %v1108, 1
  %v1111 = vsel %vm1109, %v1103, 0.0
  %v1112 = vsel %vm1110, %v1099, 0.0
  %v1113 = vsel %vm1109, %v1104, 0.0
  %v1114 = vsel %vm1110, %v1100, 0.0
  %v1115 = vsel %vm1109, %v1105, 0.0
  %v1116 = vsel %vm1110, %v1101, 0.0
  %v1117 = vsel %vm1109, %v1106, 0.0
  %v1118 = vsel %vm1110, %v1102, 0.0
  %v1119 = vadd.f32 %v1008, %v1111
  %v1120 = vadd.f32 %v1009, %v1112
  %v1121 = vadd.f32 %v1010, %v1113
  %v1122 = vadd.f32 %v1011, %v1114
  %v1123 = vadd.f32 %v1012, %v1115
  %v1124 = vadd.f32 %v1013, %v1116
  %v1125 = vadd.f32 %v1014, %v1117
  %v1126 = vadd.f32 %v1015, %v1118
  %vm1127 = vcmp.le.s32.totalorder %v22, 14
  %vm1128 = vcmp.le.s32.totalorder %v23, 14
  %1129 = vrot.lane.b32.xlu0 %v1072, 127
  %v1130 = vpop.permute.xlu0 %1129
  %1131 = vrot.lane.b32.xlu0 %v1074, 127
  %v1132 = vpop.permute.xlu0 %1131
  %1133 = vrot.lane.b32.xlu0 %v1076, 127
  %v1134 = vpop.permute.xlu0 %1133
  %1135 = vrot.lane.b32.xlu0 %v1078, 127
  %v1136 = vpop.permute.xlu0 %1135
  %1137 = vrot.lane.b32.xlu0 %v1073, 127
  %v1138 = vpop.permute.xlu0 %1137
  %1139 = vrot.lane.b32.xlu0 %v1075, 127
  %v1140 = vpop.permute.xlu0 %1139
  %1141 = vrot.lane.b32.xlu0 %v1077, 127
  %v1142 = vpop.permute.xlu0 %1141
  %1143 = vrot.lane.b32.xlu0 %v1079, 127
  %v1144 = vpop.permute.xlu0 %1143
  %vm1145 = vcmp.lt.s32.totalorder %v18, 127
  %v1146 = vsel %vm1145, %v1130, %v1138
  %v1147 = vsel %vm1145, %v1132, %v1140
  %v1148 = vsel %vm1145, %v1134, %v1142
  %v1149 = vsel %vm1145, %v1136, %v1144
  %v1150 = vsel %vm1145, %v1138, %v1130
  %v1151 = vsel %vm1145, %v1140, %v1132
  %v1152 = vsel %vm1145, %v1142, %v1134
  %v1153 = vsel %vm1145, %v1144, %v1136
  %v1154 = vsel %vm1127, 1, 0
  %v1155 = vsel %vm1128, 1, 0
  %vm1156 = vcmp.eq.s32.totalorder %v1154, 1
  %vm1157 = vcmp.eq.s32.totalorder %v1155, 1
  %v1158 = vsel %vm1156, %v1146, 0.0
  %v1159 = vsel %vm1157, %v1150, 0.0
  %v1160 = vsel %vm1156, %v1147, 0.0
  %v1161 = vsel %vm1157, %v1151, 0.0
  %v1162 = vsel %vm1156, %v1148, 0.0
  %v1163 = vsel %vm1157, %v1152, 0.0
  %v1164 = vsel %vm1156, %v1149, 0.0
  %v1165 = vsel %vm1157, %v1153, 0.0
  %v1166 = vadd.f32 %v1119, %v1158
  %v1167 = vadd.f32 %v1120, %v1159
  %v1168 = vadd.f32 %v1121, %v1160
  %v1169 = vadd.f32 %v1122, %v1161
  %v1170 = vadd.f32 %v1123, %v1162
  %v1171 = vadd.f32 %v1124, %v1163
  %v1172 = vadd.f32 %v1125, %v1164
  %v1173 = vadd.f32 %v1126, %v1165
  %1174 = vset.pattern.permute.xlu0 9
  %1175 = vperm.xlu0 %1174, %v14
  %v1176 = vpop.permute.xlu0 %1175
  %1178 = vset.pattern.permute.xlu0 9
  %1179 = vperm.xlu0 %1178, %v15
  %v1180 = vpop.permute.xlu0 %1179
  %v1182 = vadd.f32 %v1166, %v1176
  %v1183 = vadd.f32 %v1167, %v1176
  %v1184 = vadd.f32 %v1168, %v1180
  %v1185 = vadd.f32 %v1169, %v1180
  %v1186 = vadd.f32 %v1170, %v1176
  %v1187 = vadd.f32 %v1171, %v1176
  %v1188 = vadd.f32 %v1172, %v1180
  %v1189 = vadd.f32 %v1173, %v1180
  %v1190 = vmax.f32 %v1182, 0.0
  %v1191 = vmax.f32 %v1183, 0.0
  %v1192 = vmax.f32 %v1184, 0.0
  %v1193 = vmax.f32 %v1185, 0.0
  %v1194 = vmax.f32 %v1186, 0.0
  %v1195 = vmax.f32 %v1187, 0.0
  %v1196 = vmax.f32 %v1188, 0.0
  %v1197 = vmax.f32 %v1189, 0.0
  %v1198 = vadd.f32 %v1190, %v1191
  %1199 = vadd.xlane.f32.xlu0 %v1198
  %v1200 = vpop.xlane.xlu0 %1199
  %v1201 = vadd.f32 %v1192, %v1193
  %1202 = vadd.xlane.f32.xlu0 %v1201
  %v1203 = vpop.xlane.xlu0 %1202
  %v1204 = vadd.f32 %v1194, %v1195
  %1205 = vadd.xlane.f32.xlu0 %v1204
  %v1206 = vpop.xlane.xlu0 %1205
  %v1207 = vadd.f32 %v1196, %v1197
  %1208 = vadd.xlane.f32.xlu0 %v1207
  %v1209 = vpop.xlane.xlu0 %1208
  %v1210 = vmul.f32 %v1200, 0.00390625
  %v1211 = vmul.f32 %v1203, 0.00390625
  %v1212 = vmul.f32 %v1206, 0.00390625
  %v1213 = vmul.f32 %v1209, 0.00390625
  %v1214 = vmul.f32 %v1210, %v14
  %v1215 = vmul.f32 %v1211, %v15
  %v1216 = vmul.f32 %v1212, %v14
  %v1217 = vmul.f32 %v1213, %v15
  %vm1218 = vcmask 121960
  %v1219 = vsel %vm1218, %v1214, 0.0
  %v1220 = vsel %vm1218, %v1215, 0.0
  %v1221 = vadd.f32 %v1219, %v1220
  %v1222 = vrot.slane %v1221, 4
  %v1223 = vadd.f32 %v1221, %v1222
  %v1224 = vrot.slane %v1223, 2
  %v1225 = vadd.f32 %v1223, %v1224
  %v1226 = vrot.slane %v1225, 1
  %v1227 = vadd.f32 %v1225, %v1226
  %v1228 = vsel %vm1218, %v1216, 0.0
  %v1229 = vsel %vm1218, %v1217, 0.0
  %v1230 = vadd.f32 %v1228, %v1229
  %v1231 = vrot.slane %v1230, 4
  %v1232 = vadd.f32 %v1230, %v1231
  %v1233 = vrot.slane %v1232, 2
  %v1234 = vadd.f32 %v1232, %v1233
  %v1235 = vrot.slane %v1234, 1
  %v1236 = vadd.f32 %v1234, %v1235
  %v1237 = vadd.f32 %v1227, %v16
  %v1238 = vadd.f32 %v1236, %v16
  %v1239 = vmax.f32 %v1237, 0.0
  %v1240 = vmax.f32 %v1238, 0.0
  %v1241 = vlaneseq
  %v1242 = vshrl.u32 %v1241, 7
  %v1243 = vsub.s32 0, %v1242
  %v1244 = vrot.slane %v1239, %v1243
  %v1245 = vlaneseq
  %v1246 = vshrl.u32 %v1245, 7
  %v1247 = vsub.s32 0, %v1246
  %v1248 = vrot.slane %v1240, %v1247
  %1251 = vrot.lane.b32.xlu0 %v1244, 126
  %v1252 = vpop.permute.xlu0 %1251
  %1253 = vrot.lane.b32.xlu0 %v1248, 126
  %v1254 = vpop.permute.xlu0 %1253
  %v1257 = vmul.f32 %v14, %v1252
  %v1258 = vmul.f32 %v15, %v1252
  %v1259 = vmul.f32 %v14, %v1254
  %v1260 = vmul.f32 %v15, %v1254
  %1265 = vrot.lane.b32.xlu0 %v1257, 117
  %v1266 = vpop.permute.xlu0 %1265
  %1267 = vrot.lane.b32.xlu0 %v1258, 117
  %v1268 = vpop.permute.xlu0 %1267
  %1269 = vrot.lane.b32.xlu0 %v1259, 117
  %v1270 = vpop.permute.xlu0 %1269
  %1271 = vrot.lane.b32.xlu0 %v1260, 117
  %v1272 = vpop.permute.xlu0 %1271
  %vm1277 = vcmask 15360
  %v1278 = vsel %vm1277, %v1266, 0.0
  %1279 = vadd.xlane.f32.xlu0 %v1278
  %v1280 = vpop.xlane.xlu0 %1279
  %v1281 = vsel %vm1277, %v1268, 0.0
  %1282 = vadd.xlane.f32.xlu0 %v1281
  %v1283 = vpop.xlane.xlu0 %1282
  %v1284 = vsel %vm1277, %v1270, 0.0
  %1285 = vadd.xlane.f32.xlu0 %v1284
  %v1286 = vpop.xlane.xlu0 %1285
  %v1287 = vsel %vm1277, %v1272, 0.0
  %1288 = vadd.xlane.f32.xlu0 %v1287
  %v1289 = vpop.xlane.xlu0 %1288
  %v1290 = vadd.f32 %v1280, %v14
  %v1291 = vadd.f32 %v1283, %v15
  %v1292 = vadd.f32 %v1286, %v14
  %v1293 = vadd.f32 %v1289, %v15
  %v1294 = vxor.u32 %v1290, 2147483648
  %v1295 = vxor.u32 %v1291, 2147483648
  %v1296 = vxor.u32 %v1292, 2147483648
  %v1297 = vxor.u32 %v1293, 2147483648
  %v1298 = vmul.f32 %v1294, 1.442695
  %v1299 = vpow.pop %v1298
  %v1300 = vmul.f32 %v1295, 1.442695
  %v1301 = vpow.pop %v1300
  %v1302 = vmul.f32 %v1296, 1.442695
  %v1303 = vpow.pop %v1302
  %v1304 = vmul.f32 %v1297, 1.442695
  %v1305 = vpow.pop %v1304
  %v1306 = vadd.f32 %v1299, 1.0
  %v1307 = vadd.f32 %v1301, 1.0
  %v1308 = vadd.f32 %v1303, 1.0
  %v1309 = vadd.f32 %v1305, 1.0
  %v1310 = vrcp.pop %v1306
  %v1311 = vmul.f32 1.0, %v1310
  %v1312 = vrcp.pop %v1307
  %v1313 = vmul.f32 1.0, %v1312
  %v1314 = vrcp.pop %v1308
  %v1315 = vmul.f32 1.0, %v1314
  %v1316 = vrcp.pop %v1309
  %v1317 = vmul.f32 1.0, %v1316
  %v1318 = vld [vmem:[%s0] sm:$0xff]
  %v1319 = vld [vmem:[%s0 + $0x8] sm:$0xff]
  %v1320 = vld [vmem:[%s0 + $0x10] sm:$0xff]
  %v1321 = vld [vmem:[%s0 + $0x18] sm:$0xff]
  %v1322 = vld [vmem:[%s0 + $0x40] sm:$0xff]
  %v1323 = vld [vmem:[%s0 + $0x48] sm:$0xff]
  %v1324 = vld [vmem:[%s0 + $0x50] sm:$0xff]
  %v1325 = vld [vmem:[%s0 + $0x58] sm:$0xff]
  %1326 = vst [vmem:[%s3] sm:$0xff] %v1318
  %1327 = vst [vmem:[%s3 + $0x8] sm:$0xff] %v1319
  %1328 = vst [vmem:[%s3 + $0x20] sm:$0xff] %v1320
  %1329 = vst [vmem:[%s3 + $0x28] sm:$0xff] %v1321
  %1330 = vst [vmem:[%s3 + $0x40] sm:$0xff] %v1322
  %1331 = vst [vmem:[%s3 + $0x48] sm:$0xff] %v1323
  %1332 = vst [vmem:[%s3 + $0x60] sm:$0xff] %v1324
  %1333 = vst [vmem:[%s3 + $0x68] sm:$0xff] %v1325
  %1335 = vset.pattern.permute.xlu0 10
  %1336 = vperm.xlu0 %1335, %v1311
  %v1337 = vpop.permute.xlu0 %1336
  %1340 = vset.pattern.permute.xlu0 10
  %1341 = vperm.xlu0 %1340, %v1313
  %v1342 = vpop.permute.xlu0 %1341
  %1345 = vset.pattern.permute.xlu0 10
  %1346 = vperm.xlu0 %1345, %v1315
  %v1347 = vpop.permute.xlu0 %1346
  %1350 = vset.pattern.permute.xlu0 10
  %1351 = vperm.xlu0 %1350, %v1317
  %v1352 = vpop.permute.xlu0 %1351
  %v1354 = vmul.f32 %v1190, %v1337
  %v1355 = vmul.f32 %v1191, %v1337
  %v1356 = vmul.f32 %v1192, %v1342
  %v1357 = vmul.f32 %v1193, %v1342
  %v1358 = vmul.f32 %v1194, %v1347
  %v1359 = vmul.f32 %v1195, %v1347
  %v1360 = vmul.f32 %v1196, %v1352
  %v1361 = vmul.f32 %v1197, %v1352
  %1362 = vst [vmem:[%s3 + $0x10] sm:$0xff] %v1354
  %1363 = vst [vmem:[%s3 + $0x18] sm:$0xff] %v1355
  %1364 = vst [vmem:[%s3 + $0x30] sm:$0xff] %v1356
  %1365 = vst [vmem:[%s3 + $0x38] sm:$0xff] %v1357
  %1366 = vst [vmem:[%s3 + $0x50] sm:$0xff] %v1358
  %1367 = vst [vmem:[%s3 + $0x58] sm:$0xff] %v1359
  %1368 = vst [vmem:[%s3 + $0x70] sm:$0xff] %v1360
  %1369 = vst [vmem:[%s3 + $0x78] sm:$0xff] %v1361
  // Predicated region
  $region14: #{ccw_block_forward.1} parent=0 // pred_check
    _
  $region15: #{ccw_block_forward.1} parent=0 // pred_check_branch
    %1371 = sbr.rel (0) target = $region17
  $region16: #{ccw_block_forward.1} parent=0 // pred_region
    _
  $region17: #{ccw_block_forward.1} parent=0 // pred_fallthru
    _
  // Predicated region
  $region18: #{ccw_block_forward.1} parent=0 // pred_check
    _
  $region19: #{ccw_block_forward.1} parent=0 // pred_check_branch
    %1373 = sbr.rel (0) target = $region21
  $region20: #{ccw_block_forward.1} parent=0 // pred_region
    _
  $region21: #{ccw_block_forward.1} parent=0 // pred_fallthru
    _

</llo_original>
